<compile_context>
chip_gen: v7x
topology: tpu7x:2x2x1
jax: 0.10.0
libtpu: 0.0.40
codegen_flags: <defaults>
</compile_context>

<pallas_src>
import functools

import jax
import jax.numpy as jnp
from jax.experimental import pallas as pl
from jax.experimental.pallas import tpu as pltpu

NEG_SLOPE = 0.2  # negative_slope of the LeakyReLU


def _gat_kernel(h_ref, hl_ref, hr_ref, scal_ref, pk_ref, out_ref, a_ref,
                *, H, F, T):
    # Edge metadata for this dst tile: int8 {0..T-1} = edge type, T = no edge.
    pk = pk_ref[...].astype(jnp.int32)                      # [TM, Np]
    edge_mask = pk < T
    hr = hr_ref[...]                                        # [TM, H]  dst logits
    hl = hl_ref[...]                                        # [H, Np]  src logits

    for hh in range(H):
        # h_e[dst, src] = scal_e[etype[dst, src], hh]  (scalar where-chain)
        he = jnp.full(pk.shape, scal_ref[0, hh], dtype=jnp.float32)
        for t in range(1, T):
            he = jnp.where(pk == t, scal_ref[t, hh], he)

        # e[dst, src] = h_l[src] + h_r[dst] + h_e[dst, src]
        e = he + hr[:, hh:hh + 1] + hl[hh:hh + 1, :]
        e = jnp.where(e > 0, e, NEG_SLOPE * e)              # LeakyReLU
        e = jnp.where(edge_mask, e, jnp.float32(-1e30))     # mask non-edges

        # edge_softmax over incoming edges (src axis); non-edges underflow to 0
        m = jnp.max(e, axis=-1, keepdims=True)
        p = jnp.exp(e - m)
        s = jnp.sum(p, axis=-1, keepdims=True)
        a = p * (1.0 / s)                                   # exact: rows sum to 1

        a_ref[hh] = a.astype(a_ref.dtype)                   # bf16 writeback
        out_ref[:, hh * F:(hh + 1) * F] = jnp.dot(
            a, h_ref[:, hh * F:(hh + 1) * F],
            preferred_element_type=jnp.float32)             # [TM, F]


def _round_up(x, m):
    return ((x + m - 1) // m) * m


def my_gat_conv(feat, adj, etype, params, attn_dtype=jnp.bfloat16):
    """Forward of myGATConv on a dense graph representation.

    Returns:
      out  [N, H, F]  float32
      a    [H, N, N]  attn_dtype  (attention, [head, dst, src] layout)
    """
    N, _ = feat.shape
    H = params["num_heads"]
    F = params["out_feats"]
    Ef = params["edge_feats"]
    HF = H * F

    Ww = params["W"]            # [H*F, Din]   (torch nn.Linear weight)
    We = params["W_e"]          # [H*Ef, Ef]
    emb = params["edge_emb"]    # [T, Ef]
    attn_l = params["attn_l"].reshape(1, H, F)
    attn_r = params["attn_r"].reshape(1, H, F)
    attn_e = params["attn_e"].reshape(1, H, Ef)
    T = emb.shape[0]
    assert T < 127, "edge-type sentinel must fit in int8"

    # ---- grid-invariant work hoisted to XLA (done once, not per tile) ----
    Np = _round_up(N, 128)                                  # lane-multiple pad
    pad = Np - N
    feat_p = jnp.pad(feat.astype(jnp.float32), ((0, pad), (0, 0)))

    w_all = Ww.T.astype(jnp.float32)                        # [Din, H*F] head-major
    h = feat_p @ w_all                                      # [Np, HF]
    h_hf = h.reshape(Np, H, F)
    h_l = jnp.sum(attn_l * h_hf, axis=-1)                   # [Np, H]
    h_r = jnp.sum(attn_r * h_hf, axis=-1)                   # [Np, H]
    hl_t = h_l.T                                            # [H, Np]

    # per-(edge-type, head) scalar:  attn_e[h] . (W_e @ edge_emb[t])[h]
    ef = (emb @ We.T).reshape(T, H, Ef)                     # [T, H, Ef]
    scal_e = jnp.sum(attn_e * ef, axis=-1).astype(jnp.float32)   # [T, H]

    # adjacency + edge type packed into ONE int8 plane (T = "no edge")
    adj_p = jnp.pad(adj.astype(jnp.float32), ((0, pad), (0, pad)))
    et_p = jnp.pad(etype.astype(jnp.int32), ((0, pad), (0, pad)))
    packed = jnp.where(adj_p > 0.0, et_p, T).astype(jnp.int8)    # [Np, Np]

    # ---- VMEM-aware dst-row tile selection ----
    try:
        vmem_cap = int(pltpu.get_tpu_info().vmem_capacity_bytes)
    except Exception:                       # conservative fallback (v7x size)
        vmem_cap = 64 * 1024 * 1024
    vmem_limit = min(int(vmem_cap * 0.6), 96 * 1024 * 1024)
    budget = vmem_limit - (4 * 1024 * 1024)
    a_bytes = jnp.dtype(attn_dtype).itemsize

    def footprint(tm):
        return (2 * Np * HF * 4             # h (grid-invariant, double-buffered)
                + 2 * H * Np * 4            # h_l^T
                + 2 * tm * H * 4            # h_r tile
                + 2 * tm * Np * 1           # packed edges tile (int8)
                + 2 * tm * HF * 4           # node-out tile
                + 2 * H * tm * Np * a_bytes)  # attention out tile

    TM = 32
    for cand in (256, 128, 64, 32):
        if Np % cand == 0 and footprint(cand) <= budget:
            TM = cand
            break
    # keep >= 2 grid steps when possible so both v7x TensorCores get work
    while Np // TM < 2 and TM > 32:
        TM //= 2
    grid = (Np // TM,)

    kernel = functools.partial(_gat_kernel, H=H, F=F, T=T)

    out_flat, a_hnn = pl.pallas_call(
        kernel,
        out_shape=(jax.ShapeDtypeStruct((Np, HF), jnp.float32),
                   jax.ShapeDtypeStruct((H, Np, Np), attn_dtype)),
        grid_spec=pltpu.PrefetchScalarGridSpec(
            num_scalar_prefetch=0,
            grid=grid,
            in_specs=[
                pl.BlockSpec((Np, HF), lambda i: (0, 0)),       # h (all src)
                pl.BlockSpec((H, Np), lambda i: (0, 0)),        # h_l^T (all src)
                pl.BlockSpec((TM, H), lambda i: (i, 0)),        # h_r (dst tile)
                pl.BlockSpec(memory_space=pltpu.MemorySpace.SMEM),  # scal_e [T,H]
                pl.BlockSpec((TM, Np), lambda i: (i, 0)),       # packed edges
            ],
            out_specs=[
                pl.BlockSpec((TM, HF), lambda i: (i, 0)),        # node out
                pl.BlockSpec((H, TM, Np), lambda i: (0, i, 0)),  # attention
            ]),
        compiler_params=pltpu.CompilerParams(
            dimension_semantics=("parallel",),
            vmem_limit_bytes=vmem_limit),
    )(h, hl_t, h_r, scal_e, packed)

    out = out_flat[:N].reshape(N, H, F)          # [N, H, F]
    a = a_hnn[:, :N, :N]                         # [head, dst, src]
    return out, a


def reference(feat, adj, etype, params):
    """Pure-JAX reference with identical semantics (for verification)."""
    N, _ = feat.shape
    H, F, Ef = params["num_heads"], params["out_feats"], params["edge_feats"]
    h = (feat @ params["W"].T).reshape(N, H, F)
    ef = (params["edge_emb"] @ params["W_e"].T).reshape(-1, H, Ef)
    h_l = jnp.sum(params["attn_l"].reshape(1, H, F) * h, axis=-1)  # [N, H]
    h_r = jnp.sum(params["attn_r"].reshape(1, H, F) * h, axis=-1)  # [N, H]
    scal_e = jnp.sum(params["attn_e"].reshape(1, H, Ef) * ef, -1)  # [T, H]
    h_e = scal_e[etype]                                            # [N, N, H]
    e = h_l[None, :, :] + h_r[:, None, :] + h_e                    # [dst, src, H]
    e = jnp.where(e > 0, e, NEG_SLOPE * e)
    mask = adj[..., None] > 0
    e = jnp.where(mask, e, -1e30)
    m = jnp.max(e, axis=1, keepdims=True)
    p = jnp.where(mask, jnp.exp(e - m), 0.0)
    a = p / jnp.sum(p, axis=1, keepdims=True)                      # [dst, src, H]
    out = jnp.einsum("dsh,shf->dhf", a, h)
    return out, a


if __name__ == "__main__":
    # small but TPU-friendly shapes
    N = 128           # nodes
    in_feats = 64
    out_feats = 32
    num_heads = 4     # H * out_feats = 128 -> lane-dense fused projection
    edge_feats = 16
    num_etypes = 5

    key = jax.random.PRNGKey(0)
    ks = jax.random.split(key, 10)

    gain = jnp.sqrt(2.0)  # calculate_gain('relu')

    def xavier(k, shape, fan_in, fan_out):
        std = gain * jnp.sqrt(2.0 / (fan_in + fan_out))
        return std * jax.random.normal(k, shape, dtype=jnp.float32)

    params = dict(
        num_heads=num_heads, out_feats=out_feats, edge_feats=edge_feats,
        W=xavier(ks[0], (num_heads * out_feats, in_feats),
                 in_feats, num_heads * out_feats),
        W_e=xavier(ks[1], (num_heads * edge_feats, edge_feats),
                   edge_feats, num_heads * edge_feats),
        edge_emb=jax.random.normal(ks[2], (num_etypes, edge_feats),
                                   dtype=jnp.float32),
        attn_l=xavier(ks[3], (1, num_heads, out_feats), num_heads, out_feats),
        attn_r=xavier(ks[4], (1, num_heads, out_feats), num_heads, out_feats),
        attn_e=xavier(ks[5], (1, num_heads, edge_feats), num_heads, edge_feats),
    )

    feat = jax.random.normal(ks[6], (N, in_feats), dtype=jnp.float32)
    # random sparse-ish graph with guaranteed self-loops (no 0-in-degree nodes)
    adj = (jax.random.uniform(ks[7], (N, N)) < 0.1).astype(jnp.float32)
    adj = jnp.maximum(adj, jnp.eye(N, dtype=jnp.float32))
    etype = jax.random.randint(ks[8], (N, N), 0, num_etypes, dtype=jnp.int32)

    out, attn = my_gat_conv(feat, adj, etype, params)
    jax.block_until_ready((out, attn))

    out_ref, attn_ref = reference(feat, adj, etype, params)
    attn_ref_hnn = jnp.transpose(attn_ref, (2, 0, 1))     # [head, dst, src]
    assert out.shape == (N, num_heads, out_feats)
    assert attn.shape == (num_heads, N, N)
    assert jnp.max(jnp.abs(out - out_ref)) < 1e-2
    assert jnp.max(jnp.abs(attn.astype(jnp.float32) - attn_ref_hnn)) < 1e-2

    print("KERNEL_OK")
</pallas_src>

<mosaic_0001>
module attributes {stable_mosaic.version = 11 : i64} {
  func.func @_gat_kernel(%arg0: i32, %arg1: memref<128x128xf32, #tpu.memory_space<vmem>>, %arg2: memref<4x128xf32, #tpu.memory_space<vmem>>, %arg3: memref<64x4xf32, #tpu.memory_space<vmem>>, %arg4: memref<5x4xf32, #tpu.memory_space<smem>>, %arg5: memref<64x128xi8, #tpu.memory_space<vmem>>, %arg6: memref<64x128xf32, #tpu.memory_space<vmem>>, %arg7: memref<4x64x128xbf16, #tpu.memory_space<vmem>>) attributes {dimension_semantics = [#tpu.dimension_semantics<parallel>], iteration_bounds = array<i64: 2>, scalar_prefetch = 0 : i64, scratch_operands = 0 : i64, tpu.core_type = #tpu.core_type<tc>, window_params = [{pipeline_mode = #tpu.pipeline_mode<synchronous>, transform_indices = @transform_0, window_bounds = array<i64: 128, 128>}, {pipeline_mode = #tpu.pipeline_mode<synchronous>, transform_indices = @transform_1, window_bounds = array<i64: 4, 128>}, {transform_indices = @transform_2, window_bounds = array<i64: 64, 4>}, {transform_indices = @transform_3, window_bounds = array<i64: 5, 4>}, {transform_indices = @transform_4, window_bounds = array<i64: 64, 128>}, {transform_indices = @transform_5, window_bounds = array<i64: 64, 128>}, {transform_indices = @transform_6, window_bounds = array<i64: 4, 64, 128>}]} {
    %c0 = arith.constant 0 : index
    %c0_0 = arith.constant 0 : index
    %0 = vector.load %arg5[%c0, %c0_0] : memref<64x128xi8, #tpu.memory_space<vmem>>, vector<64x128xi8>
    %1 = arith.extsi %0 : vector<64x128xi8> to vector<64x128xi32>
    %c5_i32 = arith.constant 5 : i32
    %2 = vector.broadcast %c5_i32 : i32 to vector<64x128xi32>
    %3 = arith.cmpi slt, %1, %2 : vector<64x128xi32>
    %c0_1 = arith.constant 0 : index
    %c0_2 = arith.constant 0 : index
    %4 = vector.load %arg3[%c0_1, %c0_2] : memref<64x4xf32, #tpu.memory_space<vmem>>, vector<64x4xf32>
    %c0_3 = arith.constant 0 : index
    %c0_4 = arith.constant 0 : index
    %5 = vector.load %arg2[%c0_3, %c0_4] : memref<4x128xf32, #tpu.memory_space<vmem>>, vector<4x128xf32>
    %c0_5 = arith.constant 0 : index
    %c0_6 = arith.constant 0 : index
    %6 = memref.load %arg4[%c0_5, %c0_6] : memref<5x4xf32, #tpu.memory_space<smem>>
    %7 = vector.broadcast %6 : f32 to vector<64x128xf32>
    %c1_i32 = arith.constant 1 : i32
    %8 = vector.broadcast %c1_i32 : i32 to vector<64x128xi32>
    %9 = arith.cmpi eq, %1, %8 : vector<64x128xi32>
    %c1 = arith.constant 1 : index
    %c0_7 = arith.constant 0 : index
    %10 = memref.load %arg4[%c1, %c0_7] : memref<5x4xf32, #tpu.memory_space<smem>>
    %11 = vector.broadcast %10 : f32 to vector<64x128xf32>
    %12 = arith.select %9, %11, %7 : vector<64x128xi1>, vector<64x128xf32>
    %c2_i32 = arith.constant 2 : i32
    %13 = vector.broadcast %c2_i32 : i32 to vector<64x128xi32>
    %14 = arith.cmpi eq, %1, %13 : vector<64x128xi32>
    %c2 = arith.constant 2 : index
    %c0_8 = arith.constant 0 : index
    %15 = memref.load %arg4[%c2, %c0_8] : memref<5x4xf32, #tpu.memory_space<smem>>
    %16 = vector.broadcast %15 : f32 to vector<64x128xf32>
    %17 = arith.select %14, %16, %12 : vector<64x128xi1>, vector<64x128xf32>
    %c3_i32 = arith.constant 3 : i32
    %18 = vector.broadcast %c3_i32 : i32 to vector<64x128xi32>
    %19 = arith.cmpi eq, %1, %18 : vector<64x128xi32>
    %c3 = arith.constant 3 : index
    %c0_9 = arith.constant 0 : index
    %20 = memref.load %arg4[%c3, %c0_9] : memref<5x4xf32, #tpu.memory_space<smem>>
    %21 = vector.broadcast %20 : f32 to vector<64x128xf32>
    %22 = arith.select %19, %21, %17 : vector<64x128xi1>, vector<64x128xf32>
    %c4_i32 = arith.constant 4 : i32
    %23 = vector.broadcast %c4_i32 : i32 to vector<64x128xi32>
    %24 = arith.cmpi eq, %1, %23 : vector<64x128xi32>
    %c4 = arith.constant 4 : index
    %c0_10 = arith.constant 0 : index
    %25 = memref.load %arg4[%c4, %c0_10] : memref<5x4xf32, #tpu.memory_space<smem>>
    %26 = vector.broadcast %25 : f32 to vector<64x128xf32>
    %27 = arith.select %24, %26, %22 : vector<64x128xi1>, vector<64x128xf32>
    %28 = vector.extract_strided_slice %4 {offsets = [0, 0], sizes = [64, 1], strides = [1, 1]} : vector<64x4xf32> to vector<64x1xf32>
    %29 = vector.broadcast %28 : vector<64x1xf32> to vector<64x128xf32>
    %30 = arith.addf %27, %29 : vector<64x128xf32>
    %31 = vector.extract_strided_slice %5 {offsets = [0, 0], sizes = [1, 128], strides = [1, 1]} : vector<4x128xf32> to vector<1x128xf32>
    %32 = vector.broadcast %31 : vector<1x128xf32> to vector<64x128xf32>
    %33 = arith.addf %30, %32 : vector<64x128xf32>
    %cst = arith.constant 0.000000e+00 : f32
    %34 = vector.broadcast %cst : f32 to vector<64x128xf32>
    %35 = arith.cmpf ogt, %33, %34 : vector<64x128xf32>
    %cst_11 = arith.constant 2.000000e-01 : f32
    %36 = vector.broadcast %cst_11 : f32 to vector<64x128xf32>
    %37 = arith.mulf %36, %33 : vector<64x128xf32>
    %38 = arith.select %35, %33, %37 : vector<64x128xi1>, vector<64x128xf32>
    %cst_12 = arith.constant -1.000000e+30 : f32
    %39 = vector.broadcast %cst_12 : f32 to vector<64x128xf32>
    %40 = arith.select %3, %38, %39 : vector<64x128xi1>, vector<64x128xf32>
    %cst_13 = arith.constant dense<0xFF800000> : vector<64xf32>
    %41 = vector.multi_reduction <maximumf>, %40, %cst_13 [1] : vector<64x128xf32> to vector<64xf32>
    %42 = vector.shape_cast %41 : vector<64xf32> to vector<64x1xf32>
    %43 = vector.broadcast %42 : vector<64x1xf32> to vector<64x128xf32>
    %44 = arith.subf %40, %43 : vector<64x128xf32>
    %45 = math.exp %44 : vector<64x128xf32>
    %cst_14 = arith.constant dense<0.000000e+00> : vector<64xf32>
    %46 = vector.multi_reduction <add>, %45, %cst_14 [1] : vector<64x128xf32> to vector<64xf32>
    %47 = vector.shape_cast %46 : vector<64xf32> to vector<64x1xf32>
    %cst_15 = arith.constant 1.000000e+00 : f32
    %48 = vector.broadcast %cst_15 : f32 to vector<64x1xf32>
    %49 = arith.divf %48, %47 : vector<64x1xf32>
    %50 = vector.broadcast %49 : vector<64x1xf32> to vector<64x128xf32>
    %51 = arith.mulf %45, %50 : vector<64x128xf32>
    %52 = arith.truncf %51 : vector<64x128xf32> to vector<64x128xbf16>
    %c0_16 = arith.constant 0 : index
    %c0_17 = arith.constant 0 : index
    %c0_18 = arith.constant 0 : index
    %53 = vector.load %arg7[%c0_16, %c0_17, %c0_18] : memref<4x64x128xbf16, #tpu.memory_space<vmem>>, vector<1x64x128xbf16>
    %54 = vector.shape_cast %53 : vector<1x64x128xbf16> to vector<64x128xbf16>
    %55 = vector.shape_cast %52 : vector<64x128xbf16> to vector<1x64x128xbf16>
    tpu.vector_store %arg7[%c0_16, %c0_17, %c0_18], %55 {strides = array<i32>} : memref<4x64x128xbf16, #tpu.memory_space<vmem>>, vector<1x64x128xbf16>,
    %c0_19 = arith.constant 0 : index
    %c0_20 = arith.constant 0 : index
    %56 = vector.load %arg1[%c0_19, %c0_20] : memref<128x128xf32, #tpu.memory_space<vmem>>, vector<128x32xf32>
    %cst_21 = arith.constant dense<0.000000e+00> : vector<64x32xf32>
    %57 = tpu.matmul %51, %56, %cst_21 {dimension_numbers = #tpu.dot_dimension_numbers<[1], [0], [0], [1], [0, 0, 1, 1], [], []>} : vector<64x128xf32>, vector<128x32xf32>, vector<64x32xf32> -> vector<64x32xf32>
    %c0_22 = arith.constant 0 : index
    %c0_23 = arith.constant 0 : index
    %58 = vector.load %arg6[%c0_22, %c0_23] : memref<64x128xf32, #tpu.memory_space<vmem>>, vector<64x32xf32>
    tpu.vector_store %arg6[%c0_22, %c0_23], %57 {strides = array<i32>} : memref<64x128xf32, #tpu.memory_space<vmem>>, vector<64x32xf32>,
    %c0_24 = arith.constant 0 : index
    %c1_25 = arith.constant 1 : index
    %59 = memref.load %arg4[%c0_24, %c1_25] : memref<5x4xf32, #tpu.memory_space<smem>>
    %60 = vector.broadcast %59 : f32 to vector<64x128xf32>
    %c1_i32_26 = arith.constant 1 : i32
    %61 = vector.broadcast %c1_i32_26 : i32 to vector<64x128xi32>
    %62 = arith.cmpi eq, %1, %61 : vector<64x128xi32>
    %c1_27 = arith.constant 1 : index
    %c1_28 = arith.constant 1 : index
    %63 = memref.load %arg4[%c1_27, %c1_28] : memref<5x4xf32, #tpu.memory_space<smem>>
    %64 = vector.broadcast %63 : f32 to vector<64x128xf32>
    %65 = arith.select %62, %64, %60 : vector<64x128xi1>, vector<64x128xf32>
    %c2_i32_29 = arith.constant 2 : i32
    %66 = vector.broadcast %c2_i32_29 : i32 to vector<64x128xi32>
    %67 = arith.cmpi eq, %1, %66 : vector<64x128xi32>
    %c2_30 = arith.constant 2 : index
    %c1_31 = arith.constant 1 : index
    %68 = memref.load %arg4[%c2_30, %c1_31] : memref<5x4xf32, #tpu.memory_space<smem>>
    %69 = vector.broadcast %68 : f32 to vector<64x128xf32>
    %70 = arith.select %67, %69, %65 : vector<64x128xi1>, vector<64x128xf32>
    %c3_i32_32 = arith.constant 3 : i32
    %71 = vector.broadcast %c3_i32_32 : i32 to vector<64x128xi32>
    %72 = arith.cmpi eq, %1, %71 : vector<64x128xi32>
    %c3_33 = arith.constant 3 : index
    %c1_34 = arith.constant 1 : index
    %73 = memref.load %arg4[%c3_33, %c1_34] : memref<5x4xf32, #tpu.memory_space<smem>>
    %74 = vector.broadcast %73 : f32 to vector<64x128xf32>
    %75 = arith.select %72, %74, %70 : vector<64x128xi1>, vector<64x128xf32>
    %c4_i32_35 = arith.constant 4 : i32
    %76 = vector.broadcast %c4_i32_35 : i32 to vector<64x128xi32>
    %77 = arith.cmpi eq, %1, %76 : vector<64x128xi32>
    %c4_36 = arith.constant 4 : index
    %c1_37 = arith.constant 1 : index
    %78 = memref.load %arg4[%c4_36, %c1_37] : memref<5x4xf32, #tpu.memory_space<smem>>
    %79 = vector.broadcast %78 : f32 to vector<64x128xf32>
    %80 = arith.select %77, %79, %75 : vector<64x128xi1>, vector<64x128xf32>
    %81 = vector.extract_strided_slice %4 {offsets = [0, 1], sizes = [64, 1], strides = [1, 1]} : vector<64x4xf32> to vector<64x1xf32>
    %82 = vector.broadcast %81 : vector<64x1xf32> to vector<64x128xf32>
    %83 = arith.addf %80, %82 : vector<64x128xf32>
    %84 = vector.extract_strided_slice %5 {offsets = [1, 0], sizes = [1, 128], strides = [1, 1]} : vector<4x128xf32> to vector<1x128xf32>
    %85 = vector.broadcast %84 : vector<1x128xf32> to vector<64x128xf32>
    %86 = arith.addf %83, %85 : vector<64x128xf32>
    %cst_38 = arith.constant 0.000000e+00 : f32
    %87 = vector.broadcast %cst_38 : f32 to vector<64x128xf32>
    %88 = arith.cmpf ogt, %86, %87 : vector<64x128xf32>
    %cst_39 = arith.constant 2.000000e-01 : f32
    %89 = vector.broadcast %cst_39 : f32 to vector<64x128xf32>
    %90 = arith.mulf %89, %86 : vector<64x128xf32>
    %91 = arith.select %88, %86, %90 : vector<64x128xi1>, vector<64x128xf32>
    %cst_40 = arith.constant -1.000000e+30 : f32
    %92 = vector.broadcast %cst_40 : f32 to vector<64x128xf32>
    %93 = arith.select %3, %91, %92 : vector<64x128xi1>, vector<64x128xf32>
    %cst_41 = arith.constant dense<0xFF800000> : vector<64xf32>
    %94 = vector.multi_reduction <maximumf>, %93, %cst_41 [1] : vector<64x128xf32> to vector<64xf32>
    %95 = vector.shape_cast %94 : vector<64xf32> to vector<64x1xf32>
    %96 = vector.broadcast %95 : vector<64x1xf32> to vector<64x128xf32>
    %97 = arith.subf %93, %96 : vector<64x128xf32>
    %98 = math.exp %97 : vector<64x128xf32>
    %cst_42 = arith.constant dense<0.000000e+00> : vector<64xf32>
    %99 = vector.multi_reduction <add>, %98, %cst_42 [1] : vector<64x128xf32> to vector<64xf32>
    %100 = vector.shape_cast %99 : vector<64xf32> to vector<64x1xf32>
    %cst_43 = arith.constant 1.000000e+00 : f32
    %101 = vector.broadcast %cst_43 : f32 to vector<64x1xf32>
    %102 = arith.divf %101, %100 : vector<64x1xf32>
    %103 = vector.broadcast %102 : vector<64x1xf32> to vector<64x128xf32>
    %104 = arith.mulf %98, %103 : vector<64x128xf32>
    %105 = arith.truncf %104 : vector<64x128xf32> to vector<64x128xbf16>
    %c1_44 = arith.constant 1 : index
    %c0_45 = arith.constant 0 : index
    %c0_46 = arith.constant 0 : index
    %106 = vector.load %arg7[%c1_44, %c0_45, %c0_46] : memref<4x64x128xbf16, #tpu.memory_space<vmem>>, vector<1x64x128xbf16>
    %107 = vector.shape_cast %106 : vector<1x64x128xbf16> to vector<64x128xbf16>
    %108 = vector.shape_cast %105 : vector<64x128xbf16> to vector<1x64x128xbf16>
    tpu.vector_store %arg7[%c1_44, %c0_45, %c0_46], %108 {strides = array<i32>} : memref<4x64x128xbf16, #tpu.memory_space<vmem>>, vector<1x64x128xbf16>,
    %c0_47 = arith.constant 0 : index
    %c32 = arith.constant 32 : index
    %109 = vector.load %arg1[%c0_47, %c32] : memref<128x128xf32, #tpu.memory_space<vmem>>, vector<128x32xf32>
    %cst_48 = arith.constant dense<0.000000e+00> : vector<64x32xf32>
    %110 = tpu.matmul %104, %109, %cst_48 {dimension_numbers = #tpu.dot_dimension_numbers<[1], [0], [0], [1], [0, 0, 1, 1], [], []>} : vector<64x128xf32>, vector<128x32xf32>, vector<64x32xf32> -> vector<64x32xf32>
    %c0_49 = arith.constant 0 : index
    %c32_50 = arith.constant 32 : index
    %111 = vector.load %arg6[%c0_49, %c32_50] : memref<64x128xf32, #tpu.memory_space<vmem>>, vector<64x32xf32>
    tpu.vector_store %arg6[%c0_49, %c32_50], %110 {strides = array<i32>} : memref<64x128xf32, #tpu.memory_space<vmem>>, vector<64x32xf32>,
    %c0_51 = arith.constant 0 : index
    %c2_52 = arith.constant 2 : index
    %112 = memref.load %arg4[%c0_51, %c2_52] : memref<5x4xf32, #tpu.memory_space<smem>>
    %113 = vector.broadcast %112 : f32 to vector<64x128xf32>
    %c1_i32_53 = arith.constant 1 : i32
    %114 = vector.broadcast %c1_i32_53 : i32 to vector<64x128xi32>
    %115 = arith.cmpi eq, %1, %114 : vector<64x128xi32>
    %c1_54 = arith.constant 1 : index
    %c2_55 = arith.constant 2 : index
    %116 = memref.load %arg4[%c1_54, %c2_55] : memref<5x4xf32, #tpu.memory_space<smem>>
    %117 = vector.broadcast %116 : f32 to vector<64x128xf32>
    %118 = arith.select %115, %117, %113 : vector<64x128xi1>, vector<64x128xf32>
    %c2_i32_56 = arith.constant 2 : i32
    %119 = vector.broadcast %c2_i32_56 : i32 to vector<64x128xi32>
    %120 = arith.cmpi eq, %1, %119 : vector<64x128xi32>
    %c2_57 = arith.constant 2 : index
    %c2_58 = arith.constant 2 : index
    %121 = memref.load %arg4[%c2_57, %c2_58] : memref<5x4xf32, #tpu.memory_space<smem>>
    %122 = vector.broadcast %121 : f32 to vector<64x128xf32>
    %123 = arith.select %120, %122, %118 : vector<64x128xi1>, vector<64x128xf32>
    %c3_i32_59 = arith.constant 3 : i32
    %124 = vector.broadcast %c3_i32_59 : i32 to vector<64x128xi32>
    %125 = arith.cmpi eq, %1, %124 : vector<64x128xi32>
    %c3_60 = arith.constant 3 : index
    %c2_61 = arith.constant 2 : index
    %126 = memref.load %arg4[%c3_60, %c2_61] : memref<5x4xf32, #tpu.memory_space<smem>>
    %127 = vector.broadcast %126 : f32 to vector<64x128xf32>
    %128 = arith.select %125, %127, %123 : vector<64x128xi1>, vector<64x128xf32>
    %c4_i32_62 = arith.constant 4 : i32
    %129 = vector.broadcast %c4_i32_62 : i32 to vector<64x128xi32>
    %130 = arith.cmpi eq, %1, %129 : vector<64x128xi32>
    %c4_63 = arith.constant 4 : index
    %c2_64 = arith.constant 2 : index
    %131 = memref.load %arg4[%c4_63, %c2_64] : memref<5x4xf32, #tpu.memory_space<smem>>
    %132 = vector.broadcast %131 : f32 to vector<64x128xf32>
    %133 = arith.select %130, %132, %128 : vector<64x128xi1>, vector<64x128xf32>
    %134 = vector.extract_strided_slice %4 {offsets = [0, 2], sizes = [64, 1], strides = [1, 1]} : vector<64x4xf32> to vector<64x1xf32>
    %135 = vector.broadcast %134 : vector<64x1xf32> to vector<64x128xf32>
    %136 = arith.addf %133, %135 : vector<64x128xf32>
    %137 = vector.extract_strided_slice %5 {offsets = [2, 0], sizes = [1, 128], strides = [1, 1]} : vector<4x128xf32> to vector<1x128xf32>
    %138 = vector.broadcast %137 : vector<1x128xf32> to vector<64x128xf32>
    %139 = arith.addf %136, %138 : vector<64x128xf32>
    %cst_65 = arith.constant 0.000000e+00 : f32
    %140 = vector.broadcast %cst_65 : f32 to vector<64x128xf32>
    %141 = arith.cmpf ogt, %139, %140 : vector<64x128xf32>
    %cst_66 = arith.constant 2.000000e-01 : f32
    %142 = vector.broadcast %cst_66 : f32 to vector<64x128xf32>
    %143 = arith.mulf %142, %139 : vector<64x128xf32>
    %144 = arith.select %141, %139, %143 : vector<64x128xi1>, vector<64x128xf32>
    %cst_67 = arith.constant -1.000000e+30 : f32
    %145 = vector.broadcast %cst_67 : f32 to vector<64x128xf32>
    %146 = arith.select %3, %144, %145 : vector<64x128xi1>, vector<64x128xf32>
    %cst_68 = arith.constant dense<0xFF800000> : vector<64xf32>
    %147 = vector.multi_reduction <maximumf>, %146, %cst_68 [1] : vector<64x128xf32> to vector<64xf32>
    %148 = vector.shape_cast %147 : vector<64xf32> to vector<64x1xf32>
    %149 = vector.broadcast %148 : vector<64x1xf32> to vector<64x128xf32>
    %150 = arith.subf %146, %149 : vector<64x128xf32>
    %151 = math.exp %150 : vector<64x128xf32>
    %cst_69 = arith.constant dense<0.000000e+00> : vector<64xf32>
    %152 = vector.multi_reduction <add>, %151, %cst_69 [1] : vector<64x128xf32> to vector<64xf32>
    %153 = vector.shape_cast %152 : vector<64xf32> to vector<64x1xf32>
    %cst_70 = arith.constant 1.000000e+00 : f32
    %154 = vector.broadcast %cst_70 : f32 to vector<64x1xf32>
    %155 = arith.divf %154, %153 : vector<64x1xf32>
    %156 = vector.broadcast %155 : vector<64x1xf32> to vector<64x128xf32>
    %157 = arith.mulf %151, %156 : vector<64x128xf32>
    %158 = arith.truncf %157 : vector<64x128xf32> to vector<64x128xbf16>
    %c2_71 = arith.constant 2 : index
    %c0_72 = arith.constant 0 : index
    %c0_73 = arith.constant 0 : index
    %159 = vector.load %arg7[%c2_71, %c0_72, %c0_73] : memref<4x64x128xbf16, #tpu.memory_space<vmem>>, vector<1x64x128xbf16>
    %160 = vector.shape_cast %159 : vector<1x64x128xbf16> to vector<64x128xbf16>
    %161 = vector.shape_cast %158 : vector<64x128xbf16> to vector<1x64x128xbf16>
    tpu.vector_store %arg7[%c2_71, %c0_72, %c0_73], %161 {strides = array<i32>} : memref<4x64x128xbf16, #tpu.memory_space<vmem>>, vector<1x64x128xbf16>,
    %c0_74 = arith.constant 0 : index
    %c64 = arith.constant 64 : index
    %162 = vector.load %arg1[%c0_74, %c64] : memref<128x128xf32, #tpu.memory_space<vmem>>, vector<128x32xf32>
    %cst_75 = arith.constant dense<0.000000e+00> : vector<64x32xf32>
    %163 = tpu.matmul %157, %162, %cst_75 {dimension_numbers = #tpu.dot_dimension_numbers<[1], [0], [0], [1], [0, 0, 1, 1], [], []>} : vector<64x128xf32>, vector<128x32xf32>, vector<64x32xf32> -> vector<64x32xf32>
    %c0_76 = arith.constant 0 : index
    %c64_77 = arith.constant 64 : index
    %164 = vector.load %arg6[%c0_76, %c64_77] : memref<64x128xf32, #tpu.memory_space<vmem>>, vector<64x32xf32>
    tpu.vector_store %arg6[%c0_76, %c64_77], %163 {strides = array<i32>} : memref<64x128xf32, #tpu.memory_space<vmem>>, vector<64x32xf32>,
    %c0_78 = arith.constant 0 : index
    %c3_79 = arith.constant 3 : index
    %165 = memref.load %arg4[%c0_78, %c3_79] : memref<5x4xf32, #tpu.memory_space<smem>>
    %166 = vector.broadcast %165 : f32 to vector<64x128xf32>
    %c1_i32_80 = arith.constant 1 : i32
    %167 = vector.broadcast %c1_i32_80 : i32 to vector<64x128xi32>
    %168 = arith.cmpi eq, %1, %167 : vector<64x128xi32>
    %c1_81 = arith.constant 1 : index
    %c3_82 = arith.constant 3 : index
    %169 = memref.load %arg4[%c1_81, %c3_82] : memref<5x4xf32, #tpu.memory_space<smem>>
    %170 = vector.broadcast %169 : f32 to vector<64x128xf32>
    %171 = arith.select %168, %170, %166 : vector<64x128xi1>, vector<64x128xf32>
    %c2_i32_83 = arith.constant 2 : i32
    %172 = vector.broadcast %c2_i32_83 : i32 to vector<64x128xi32>
    %173 = arith.cmpi eq, %1, %172 : vector<64x128xi32>
    %c2_84 = arith.constant 2 : index
    %c3_85 = arith.constant 3 : index
    %174 = memref.load %arg4[%c2_84, %c3_85] : memref<5x4xf32, #tpu.memory_space<smem>>
    %175 = vector.broadcast %174 : f32 to vector<64x128xf32>
    %176 = arith.select %173, %175, %171 : vector<64x128xi1>, vector<64x128xf32>
    %c3_i32_86 = arith.constant 3 : i32
    %177 = vector.broadcast %c3_i32_86 : i32 to vector<64x128xi32>
    %178 = arith.cmpi eq, %1, %177 : vector<64x128xi32>
    %c3_87 = arith.constant 3 : index
    %c3_88 = arith.constant 3 : index
    %179 = memref.load %arg4[%c3_87, %c3_88] : memref<5x4xf32, #tpu.memory_space<smem>>
    %180 = vector.broadcast %179 : f32 to vector<64x128xf32>
    %181 = arith.select %178, %180, %176 : vector<64x128xi1>, vector<64x128xf32>
    %c4_i32_89 = arith.constant 4 : i32
    %182 = vector.broadcast %c4_i32_89 : i32 to vector<64x128xi32>
    %183 = arith.cmpi eq, %1, %182 : vector<64x128xi32>
    %c4_90 = arith.constant 4 : index
    %c3_91 = arith.constant 3 : index
    %184 = memref.load %arg4[%c4_90, %c3_91] : memref<5x4xf32, #tpu.memory_space<smem>>
    %185 = vector.broadcast %184 : f32 to vector<64x128xf32>
    %186 = arith.select %183, %185, %181 : vector<64x128xi1>, vector<64x128xf32>
    %187 = vector.extract_strided_slice %4 {offsets = [0, 3], sizes = [64, 1], strides = [1, 1]} : vector<64x4xf32> to vector<64x1xf32>
    %188 = vector.broadcast %187 : vector<64x1xf32> to vector<64x128xf32>
    %189 = arith.addf %186, %188 : vector<64x128xf32>
    %190 = vector.extract_strided_slice %5 {offsets = [3, 0], sizes = [1, 128], strides = [1, 1]} : vector<4x128xf32> to vector<1x128xf32>
    %191 = vector.broadcast %190 : vector<1x128xf32> to vector<64x128xf32>
    %192 = arith.addf %189, %191 : vector<64x128xf32>
    %cst_92 = arith.constant 0.000000e+00 : f32
    %193 = vector.broadcast %cst_92 : f32 to vector<64x128xf32>
    %194 = arith.cmpf ogt, %192, %193 : vector<64x128xf32>
    %cst_93 = arith.constant 2.000000e-01 : f32
    %195 = vector.broadcast %cst_93 : f32 to vector<64x128xf32>
    %196 = arith.mulf %195, %192 : vector<64x128xf32>
    %197 = arith.select %194, %192, %196 : vector<64x128xi1>, vector<64x128xf32>
    %cst_94 = arith.constant -1.000000e+30 : f32
    %198 = vector.broadcast %cst_94 : f32 to vector<64x128xf32>
    %199 = arith.select %3, %197, %198 : vector<64x128xi1>, vector<64x128xf32>
    %cst_95 = arith.constant dense<0xFF800000> : vector<64xf32>
    %200 = vector.multi_reduction <maximumf>, %199, %cst_95 [1] : vector<64x128xf32> to vector<64xf32>
    %201 = vector.shape_cast %200 : vector<64xf32> to vector<64x1xf32>
    %202 = vector.broadcast %201 : vector<64x1xf32> to vector<64x128xf32>
    %203 = arith.subf %199, %202 : vector<64x128xf32>
    %204 = math.exp %203 : vector<64x128xf32>
    %cst_96 = arith.constant dense<0.000000e+00> : vector<64xf32>
    %205 = vector.multi_reduction <add>, %204, %cst_96 [1] : vector<64x128xf32> to vector<64xf32>
    %206 = vector.shape_cast %205 : vector<64xf32> to vector<64x1xf32>
    %cst_97 = arith.constant 1.000000e+00 : f32
    %207 = vector.broadcast %cst_97 : f32 to vector<64x1xf32>
    %208 = arith.divf %207, %206 : vector<64x1xf32>
    %209 = vector.broadcast %208 : vector<64x1xf32> to vector<64x128xf32>
    %210 = arith.mulf %204, %209 : vector<64x128xf32>
    %211 = arith.truncf %210 : vector<64x128xf32> to vector<64x128xbf16>
    %c3_98 = arith.constant 3 : index
    %c0_99 = arith.constant 0 : index
    %c0_100 = arith.constant 0 : index
    %212 = vector.load %arg7[%c3_98, %c0_99, %c0_100] : memref<4x64x128xbf16, #tpu.memory_space<vmem>>, vector<1x64x128xbf16>
    %213 = vector.shape_cast %212 : vector<1x64x128xbf16> to vector<64x128xbf16>
    %214 = vector.shape_cast %211 : vector<64x128xbf16> to vector<1x64x128xbf16>
    tpu.vector_store %arg7[%c3_98, %c0_99, %c0_100], %214 {strides = array<i32>} : memref<4x64x128xbf16, #tpu.memory_space<vmem>>, vector<1x64x128xbf16>,
    %c0_101 = arith.constant 0 : index
    %c96 = arith.constant 96 : index
    %215 = vector.load %arg1[%c0_101, %c96] : memref<128x128xf32, #tpu.memory_space<vmem>>, vector<128x32xf32>
    %cst_102 = arith.constant dense<0.000000e+00> : vector<64x32xf32>
    %216 = tpu.matmul %210, %215, %cst_102 {dimension_numbers = #tpu.dot_dimension_numbers<[1], [0], [0], [1], [0, 0, 1, 1], [], []>} : vector<64x128xf32>, vector<128x32xf32>, vector<64x32xf32> -> vector<64x32xf32>
    %c0_103 = arith.constant 0 : index
    %c96_104 = arith.constant 96 : index
    %217 = vector.load %arg6[%c0_103, %c96_104] : memref<64x128xf32, #tpu.memory_space<vmem>>, vector<64x32xf32>
    tpu.vector_store %arg6[%c0_103, %c96_104], %216 {strides = array<i32>} : memref<64x128xf32, #tpu.memory_space<vmem>>, vector<64x32xf32>,
    return
  }
  func.func @transform_0(%arg0: i32) -> (i32, i32) {
    %c0_i32 = arith.constant 0 : i32
    %c0_i32_0 = arith.constant 0 : i32
    %c0_i32_1 = arith.constant 0 : i32
    return %c0_i32, %c0_i32_0 : i32, i32
  }
  func.func @transform_1(%arg0: i32) -> (i32, i32) {
    %c0_i32 = arith.constant 0 : i32
    %c0_i32_0 = arith.constant 0 : i32
    %c0_i32_1 = arith.constant 0 : i32
    return %c0_i32, %c0_i32_0 : i32, i32
  }
  func.func @transform_2(%arg0: i32) -> (i32, i32) {
    %c0_i32 = arith.constant 0 : i32
    %c0_i32_0 = arith.constant 0 : i32
    return %arg0, %c0_i32 : i32, i32
  }
  func.func @transform_3(%arg0: i32) -> (i32, i32) {
    %c0_i32 = arith.constant 0 : i32
    %c0_i32_0 = arith.constant 0 : i32
    %c0_i32_1 = arith.constant 0 : i32
    return %c0_i32, %c0_i32_0 : i32, i32
  }
  func.func @transform_4(%arg0: i32) -> (i32, i32) {
    %c0_i32 = arith.constant 0 : i32
    %c0_i32_0 = arith.constant 0 : i32
    return %arg0, %c0_i32 : i32, i32
  }
  func.func @transform_5(%arg0: i32) -> (i32, i32) {
    %c0_i32 = arith.constant 0 : i32
    %c0_i32_0 = arith.constant 0 : i32
    return %arg0, %c0_i32 : i32, i32
  }
  func.func @transform_6(%arg0: i32) -> (i32, i32, i32) {
    %c0_i32 = arith.constant 0 : i32
    %c0_i32_0 = arith.constant 0 : i32
    %c0_i32_1 = arith.constant 0 : i32
    return %c0_i32, %arg0, %c0_i32_0 : i32, i32, i32
  }
}

</mosaic_0001>

<llo_original>
// kernel: tpu_custom_call.1
$region0: #{tpu_custom_call.1}
  #allocation0 [shape = 'u32[]', space=smem, size = 0x4, offset = 0x4, fixed_abs, tag = 'smem constant byte address 0x4 - core index']
  #allocation1 [shape = 'u32[144,128]{1,0:T(1,128)}', space=vmem, size = 0x12000, scoped, tag = 'internal scratch']
  #allocation10 [shape = 's32[]', space=sflag, size = 0x4, offset = 0, fixed_abs, tag = 'sflag constant byte address 0x0 - dummy sync flag']
  %s0 = inlined_call_operand.vmem [shape: f32[128,128], index: 0, kind: input, shape index: {}]
  %s1 = inlined_call_operand.vmem [shape: f32[4,128], index: 1, kind: input, shape index: {}]
  %s2 = inlined_call_operand.vmem [shape: f32[128,4], index: 2, kind: input, shape index: {}]
  %s3 = inlined_call_operand.vmem [shape: f32[5,4], index: 3, kind: input, shape index: {}]
  %s4 = inlined_call_operand.hbm [shape: s8[128,128], index: 4, kind: input, shape index: {}]
  %s5 = inlined_call_operand.hbm [shape: f32[128,128], index: 5, kind: output, shape index: {0}]
  %s6 = inlined_call_operand.hbm [shape: bf16[4,128,128], index: 6, kind: output, shape index: {1}]
  %7 = xla_tuple %s5, %s6
  %s8 = sld [smem:[#allocation0]]
  $region69: #{tpu_custom_call.1} parent=0
    _
  %s10 = ssub.s32 1, %s8
  %s11 = scalar_select 0, %s10, %s8
  $region1: #{tpu_custom_call.1} parent=0
    #allocation2 [shape = 'u8[4096]{0}', space=smem, size = 0x1000, scoped, tag = 'input window, operand 3, single buffered']
    #allocation3 [shape = 's32[2]{0}', space=sflag, size = 0x8, scoped, tag = 'scoped memory for tpu_custom_call.1']
    #allocation4 [shape = 's32[2]{0}', space=sflag, size = 0x8, scoped, tag = 'scoped memory for tpu_custom_call.1']
    #allocation5 [shape = 's32[2]{0}', space=sflag, size = 0x8, scoped, tag = 'scoped memory for tpu_custom_call.1']
    #allocation6 [shape = 'u8[16384]{0}', space=vmem, size = 0x4000, scoped, tag = 'input window, operand 4']
    #allocation7 [shape = 'u8[65536]{0}', space=vmem, size = 0x10000, scoped, tag = 'output window, operand 0']
    #allocation8 [shape = 'u8[131072]{0}', space=vmem, size = 0x20000, scoped, tag = 'output window, operand 1']
    #allocation9 [shape = 's32[2]{0}', space=sflag, size = 0x8, scoped, tag = 'scoped memory for tpu_custom_call.1']
    %12 = vsyncpa [#allocation5], 0
    %13 = vsyncpa [#allocation3], 0
    %s14 = scalar_lea.sflag [#allocation3], 1
    %15 = vsyncpa %s14, 0
    %16 = vsyncpa [#allocation4], 0
    %s17 = scalar_lea.sflag [#allocation4], 1
    %18 = vsyncpa %s17, 0
    %19 = vsyncpa [#allocation9], 0
    %s20 = scalar_lea.sflag [#allocation9], 1
    %21 = vsyncpa %s20, 0
    loop: start=0, step=1, limit=4
    $region2: #{tpu_custom_call.1} parent=1 // loop_pre_header
      _
    $region3: #{tpu_custom_call.1} parent=1 // loop_header
      %s23 = sphi 0, %s27
      %p24 = scmp.ge.s32.totalorder %s23, 4
      %s31 = sphi 0, %s31
      %s33 = sphi 0, %s31
      %s34 = sphi 0, %s33
      %s48 = sphi 0, %s34
      %s52 = sphi 0, %s52
      %s54 = sphi 0, %s52
      %s55 = sphi 0, %s54
      %s69 = sphi 0, %s55
      %s75 = sphi 0, %s77
      %s78 = sphi 0, %s75
      %s79 = sphi 0, %s78
      %s95 = sphi 0, %s79
      %s99 = sphi 0, %s99
      %s101 = sphi 0, %s99
      %s102 = sphi 0, %s101
      %s116 = sphi 0, %s102
      %s122 = sphi 0, %s124
      %s125 = sphi 0, %s122
      %s126 = sphi 0, %s125
      %s142 = sphi 0, %s126
      %s148 = sphi 0, %s150
      %s151 = sphi 0, %s148
      %s152 = sphi 0, %s151
      %s168 = sphi 0, %s152
      %s174 = sphi 0, %s176
      %s177 = sphi 0, %s174
      %s178 = sphi 0, %s177
      %s194 = sphi 0, %s178
    $region4: #{tpu_custom_call.1} parent=1 // loop_header_branch
      %26 = sbr.rel (%p24) target = $region8
    $region5: #{tpu_custom_call.1} parent=1 // loop_body
      %s28 = ssub.s32 %s23, 1
      %s29 = ssub.s32 %s23, 2
      %s30 = sadd.s32 %s23, 1
      %s32 = sadd.s32 %s31, 1
      %p35 = scmp.eq.s32.totalorder %s23, 1
      %p36 = scmp.ne.s32.totalorder %s31, %s33
      %p37 = scmp.eq.s32.totalorder %s23, 0
      %p38 = por %p36, %p37
      %p39 = scmp.ne.s32.totalorder %s31, %s33
      %p40 = scmp.eq.s32.totalorder %s28, 1
      %p41 = por %p39, %p40
      %p42 = scmp.ne.s32.totalorder %s33, %s34
      %p43 = scmp.eq.s32.totalorder %s28, 0
      %p44 = por %p42, %p43
      %p45 = scmp.ne.s32.totalorder %s33, %s34
      %p46 = scmp.eq.s32.totalorder %s29, 1
      %p47 = por %p45, %p46
      %p49 = scmp.ne.s32.totalorder %s34, %s48
      %p50 = scmp.eq.s32.totalorder %s29, 0
      %p51 = por %p49, %p50
      %s53 = sadd.s32 %s52, 1
      %p56 = scmp.eq.s32.totalorder %s23, 1
      %p57 = scmp.ne.s32.totalorder %s52, %s54
      %p58 = scmp.eq.s32.totalorder %s23, 0
      %p59 = por %p57, %p58
      %p60 = scmp.ne.s32.totalorder %s52, %s54
      %p61 = scmp.eq.s32.totalorder %s28, 1
      %p62 = por %p60, %p61
      %p63 = scmp.ne.s32.totalorder %s54, %s55
      %p64 = scmp.eq.s32.totalorder %s28, 0
      %p65 = por %p63, %p64
      %p66 = scmp.ne.s32.totalorder %s54, %s55
      %p67 = scmp.eq.s32.totalorder %s29, 1
      %p68 = por %p66, %p67
      %p70 = scmp.ne.s32.totalorder %s55, %s69
      %p71 = scmp.eq.s32.totalorder %s29, 0
      %p72 = por %p70, %p71
      %s73 = ssub.s32 %s23, %s30
      %p74 = scmp.eq.s32.totalorder %s73, 0
      %s76 = sadd.s32 %s75, 1
      %s77 = scalar_select %p74, %s75, %s76
      %p80 = pneg %p74
      %p81 = scmp.eq.s32.totalorder %s23, 1
      %p82 = por %p80, %p81
      %p83 = scmp.ne.s32.totalorder %s75, %s78
      %p84 = scmp.eq.s32.totalorder %s23, 0
      %p85 = por %p83, %p84
      %p86 = scmp.ne.s32.totalorder %s75, %s78
      %p87 = scmp.eq.s32.totalorder %s28, 1
      %p88 = por %p86, %p87
      %p89 = scmp.ne.s32.totalorder %s78, %s79
      %p90 = scmp.eq.s32.totalorder %s28, 0
      %p91 = por %p89, %p90
      %p92 = scmp.ne.s32.totalorder %s78, %s79
      %p93 = scmp.eq.s32.totalorder %s29, 1
      %p94 = por %p92, %p93
      %p96 = scmp.ne.s32.totalorder %s79, %s95
      %p97 = scmp.eq.s32.totalorder %s29, 0
      %p98 = por %p96, %p97
      %s100 = sadd.s32 %s99, 1
      %p103 = scmp.eq.s32.totalorder %s23, 1
      %p104 = scmp.ne.s32.totalorder %s99, %s101
      %p105 = scmp.eq.s32.totalorder %s23, 0
      %p106 = por %p104, %p105
      %p107 = scmp.ne.s32.totalorder %s99, %s101
      %p108 = scmp.eq.s32.totalorder %s28, 1
      %p109 = por %p107, %p108
      %p110 = scmp.ne.s32.totalorder %s101, %s102
      %p111 = scmp.eq.s32.totalorder %s28, 0
      %p112 = por %p110, %p111
      %p113 = scmp.ne.s32.totalorder %s101, %s102
      %p114 = scmp.eq.s32.totalorder %s29, 1
      %p115 = por %p113, %p114
      %p117 = scmp.ne.s32.totalorder %s102, %s116
      %p118 = scmp.eq.s32.totalorder %s29, 0
      %p119 = por %p117, %p118
      %s120 = ssub.s32 %s23, %s30
      %p121 = scmp.eq.s32.totalorder %s120, 0
      %s123 = sadd.s32 %s122, 1
      %s124 = scalar_select %p121, %s122, %s123
      %p127 = pneg %p121
      %p128 = scmp.eq.s32.totalorder %s23, 1
      %p129 = por %p127, %p128
      %p130 = scmp.ne.s32.totalorder %s122, %s125
      %p131 = scmp.eq.s32.totalorder %s23, 0
      %p132 = por %p130, %p131
      %p133 = scmp.ne.s32.totalorder %s122, %s125
      %p134 = scmp.eq.s32.totalorder %s28, 1
      %p135 = por %p133, %p134
      %p136 = scmp.ne.s32.totalorder %s125, %s126
      %p137 = scmp.eq.s32.totalorder %s28, 0
      %p138 = por %p136, %p137
      %p139 = scmp.ne.s32.totalorder %s125, %s126
      %p140 = scmp.eq.s32.totalorder %s29, 1
      %p141 = por %p139, %p140
      %p143 = scmp.ne.s32.totalorder %s126, %s142
      %p144 = scmp.eq.s32.totalorder %s29, 0
      %p145 = por %p143, %p144
      %s146 = ssub.s32 %s23, %s30
      %p147 = scmp.eq.s32.totalorder %s146, 0
      %s149 = sadd.s32 %s148, 1
      %s150 = scalar_select %p147, %s148, %s149
      %p153 = pneg %p147
      %p154 = scmp.eq.s32.totalorder %s23, 1
      %p155 = por %p153, %p154
      %p156 = scmp.ne.s32.totalorder %s148, %s151
      %p157 = scmp.eq.s32.totalorder %s23, 0
      %p158 = por %p156, %p157
      %p159 = scmp.ne.s32.totalorder %s148, %s151
      %p160 = scmp.eq.s32.totalorder %s28, 1
      %p161 = por %p159, %p160
      %p162 = scmp.ne.s32.totalorder %s151, %s152
      %p163 = scmp.eq.s32.totalorder %s28, 0
      %p164 = por %p162, %p163
      %p165 = scmp.ne.s32.totalorder %s151, %s152
      %p166 = scmp.eq.s32.totalorder %s29, 1
      %p167 = por %p165, %p166
      %p169 = scmp.ne.s32.totalorder %s152, %s168
      %p170 = scmp.eq.s32.totalorder %s29, 0
      %p171 = por %p169, %p170
      %s172 = ssub.s32 %s23, %s30
      %p173 = scmp.eq.s32.totalorder %s172, 0
      %s175 = sadd.s32 %s174, 1
      %s176 = scalar_select %p173, %s174, %s175
      %p179 = pneg %p173
      %p180 = scmp.eq.s32.totalorder %s23, 1
      %p181 = por %p179, %p180
      %p182 = scmp.ne.s32.totalorder %s174, %s177
      %p183 = scmp.eq.s32.totalorder %s23, 0
      %p184 = por %p182, %p183
      %p185 = scmp.ne.s32.totalorder %s174, %s177
      %p186 = scmp.eq.s32.totalorder %s28, 1
      %p187 = por %p185, %p186
      %p188 = scmp.ne.s32.totalorder %s177, %s178
      %p189 = scmp.eq.s32.totalorder %s28, 0
      %p190 = por %p188, %p189
      %p191 = scmp.ne.s32.totalorder %s177, %s178
      %p192 = scmp.eq.s32.totalorder %s29, 1
      %p193 = por %p191, %p192
      %p195 = scmp.ne.s32.totalorder %s178, %s194
      %p196 = scmp.eq.s32.totalorder %s29, 0
      %p197 = por %p195, %p196
      %p198 = scmp.le.s32.totalorder 1, %s23
      %p199 = scmp.lt.s32.totalorder %s23, 3
      %p200 = pnand %p198, %p199
      %p201 = pneg %p200
      // Predicated region
      $region9: #{tpu_custom_call.1} parent=5 // pred_check
        _
      $region10: #{tpu_custom_call.1} parent=5 // pred_check_branch
        %203 = sbr.rel (%p200) target = $region12
      $region11: #{tpu_custom_call.1} parent=5 // pred_region
        %s204 = ssub.s32 %s23, 1
        // Predicated region
        $region13: #{tpu_custom_call.1} parent=11 // pred_check
          %p205 = pneg %p44
        $region14: #{tpu_custom_call.1} parent=11 // pred_check_branch
          %207 = sbr.rel (%p205) target = $region16
        $region15: #{tpu_custom_call.1} parent=11 // pred_region
          _
        $region16: #{tpu_custom_call.1} parent=11 // pred_fallthru
          _
        // Predicated region
        $region17: #{tpu_custom_call.1} parent=11 // pred_check
          %p208 = pneg %p65
        $region18: #{tpu_custom_call.1} parent=11 // pred_check_branch
          %210 = sbr.rel (%p208) target = $region20
        $region19: #{tpu_custom_call.1} parent=11 // pred_region
          _
        $region20: #{tpu_custom_call.1} parent=11 // pred_fallthru
          _
        // Predicated region
        $region21: #{tpu_custom_call.1} parent=11 // pred_check
          %p211 = pneg %p112
        $region22: #{tpu_custom_call.1} parent=11 // pred_check_branch
          %213 = sbr.rel (%p211) target = $region24
        $region23: #{tpu_custom_call.1} parent=11 // pred_region
          %s215 = ssub.s32 128, 128
          %216 = vsyncadd [#allocation5], %s215
          %s218 = sshll.u32 %s3, 4
          %s219 = int_to_ptr.vmem [resolvable:$true] %s218
          %221 = dma.vmem_to_smem %s219, 128, [#allocation2], [#allocation5]
        $region24: #{tpu_custom_call.1} parent=11 // pred_fallthru
          _
      $region12: #{tpu_custom_call.1} parent=5 // pred_fallthru
        _
      %p222 = scmp.lt.s32.totalorder %s23, 2
      // Predicated region
      $region25: #{tpu_custom_call.1} parent=5 // pred_check
        %p223 = pneg %p222
      $region26: #{tpu_custom_call.1} parent=5 // pred_check_branch
        %225 = sbr.rel (%p223) target = $region28
      $region27: #{tpu_custom_call.1} parent=5 // pred_region
        // Predicated region
        $region29: #{tpu_custom_call.1} parent=27 // pred_check
          %p226 = pneg %p85
        $region30: #{tpu_custom_call.1} parent=27 // pred_check_branch
          %228 = sbr.rel (%p226) target = $region32
        $region31: #{tpu_custom_call.1} parent=27 // pred_region
          %s229 = smul.u32 8, %s23
          %p230 = scmp.lt.s32.totalorder %s229, 15
          %s231 = scalar_select %p230, %s229, 15
          %s232 = smul.addr %s231, 8
          %s233 = scalar_lea.vmem %s2, %s232
          %s234 = smul.u32 8, %s23
        $region32: #{tpu_custom_call.1} parent=27 // pred_fallthru
          _
        // Predicated region
        $region33: #{tpu_custom_call.1} parent=27 // pred_check
          %p235 = pneg %p132
        $region34: #{tpu_custom_call.1} parent=27 // pred_check_branch
          %237 = sbr.rel (%p235) target = $region36
        $region35: #{tpu_custom_call.1} parent=27 // pred_region
          %s238 = sand.u32 %s122, 1
          %s239 = scalar_lea.sflag [#allocation3], %s238
          %s240 = sand.u32 %s122, 1
          %s241 = smul.addr %s240, 16
          %s242 = scalar_lea.vmem [#allocation6], %s241
          %s243 = smul.u32 2, %s23
          %s245 = ssub.s32 256, 256
          %246 = vsyncadd %s239, %s245
          %s247 = smul.addr %s243, 128
          %s248 = scalar_lea.hbm %s4, %s247
          %s249 = sshll.u32 %s242, 4
          %s250 = int_to_ptr.vmem [resolvable:$true] %s249
          %255 = dma.hbm_to_vmem [thread:$0]  %s248, 256, %s250, %s239, 128, 128, 8
        $region36: #{tpu_custom_call.1} parent=27 // pred_fallthru
          _
      $region28: #{tpu_custom_call.1} parent=5 // pred_fallthru
        _
      %p256 = scmp.le.s32.totalorder 1, %s23
      %p257 = scmp.lt.s32.totalorder %s23, 3
      %p258 = pnand %p256, %p257
      %p259 = pneg %p258
      // Predicated region
      $region37: #{tpu_custom_call.1} parent=5 // pred_check
        _
      $region38: #{tpu_custom_call.1} parent=5 // pred_check_branch
        %261 = sbr.rel (%p258) target = $region40
      $region39: #{tpu_custom_call.1} parent=5 // pred_region
        %s262 = ssub.s32 %s23, 1
        // Predicated region
        $region41: #{tpu_custom_call.1} parent=39 // pred_check
          %p263 = pneg %p112
        $region42: #{tpu_custom_call.1} parent=39 // pred_check_branch
          %265 = sbr.rel (%p263) target = $region44
        $region43: #{tpu_custom_call.1} parent=39 // pred_region
          %266 = dma.done [#allocation5], 128
        $region44: #{tpu_custom_call.1} parent=39 // pred_fallthru
          _
        %s267 = sand.u32 %s125, 1
        %s268 = scalar_lea.sflag [#allocation3], %s267
        %s269 = sand.u32 %s125, 1
        %s270 = smul.addr %s269, 16
        %s271 = scalar_lea.vmem [#allocation6], %s270
        // Predicated region
        $region45: #{tpu_custom_call.1} parent=39 // pred_check
          %p272 = pneg %p138
        $region46: #{tpu_custom_call.1} parent=39 // pred_check_branch
          %274 = sbr.rel (%p272) target = $region48
        $region47: #{tpu_custom_call.1} parent=39 // pred_region
          %275 = dma.done %s268, 256
        $region48: #{tpu_custom_call.1} parent=39 // pred_fallthru
          _
        %276 = sfence
        %p277 = pneg %p44
        %p278 = pneg %p41
        %p279 = pneg %p65
        %p280 = pneg %p62
        %s281 = smul.u32 8, %s28
        %p282 = scmp.lt.s32.totalorder %s281, 15
        %s283 = scalar_select %p282, %s281, 15
        %s284 = smul.addr %s283, 8
        %s285 = scalar_lea.vmem %s2, %s284
        %p286 = pneg %p91
        %p287 = pneg %p88
        %p288 = pneg %p112
        %p289 = pneg %p109
        %s290 = sand.u32 %s125, 1
        %s291 = scalar_lea.sflag [#allocation3], %s290
        %s292 = sand.u32 %s125, 1
        %s293 = smul.addr %s292, 16
        %s294 = scalar_lea.vmem [#allocation6], %s293
        %p295 = pneg %p138
        %p296 = pneg %p135
        %p297 = pneg %p164
        %p298 = pneg %p161
        %s299 = sand.u32 %s151, 1
        %s300 = scalar_lea.sflag [#allocation4], %s299
        %s301 = sand.u32 %s151, 1
        %s302 = smul.addr %s301, 64
        %s303 = scalar_lea.vmem [#allocation7], %s302
        %p304 = pneg %p190
        %p305 = pneg %p187
        %s306 = sand.u32 %s177, 1
        %s307 = scalar_lea.sflag [#allocation9], %s306
        %s308 = sand.u32 %s177, 1
        %s309 = smul.addr %s308, 128
        %s310 = scalar_lea.vmem [#allocation8], %s309
        %s311 = smul.u32 8, %s28
        %p312 = scmp.lt.s32.totalorder %s311, 15
        %s313 = scalar_select %p312, %s311, 15
        %s314 = smul.addr %s313, 8
        %s315 = scalar_lea.vmem %s2, %s314
        %s316 = smul.u32 8, %s28
        %s317 = smul.u32 2, %s28
        %s318 = smul.u32 8, %s28
        %s319 = smul.u32 8, %s28
        %v320 = vld [vmem:[%s271] sm:$0xff]
        %v321 = vld [vmem:[%s271 + $0x8] sm:$0xff]
        %v322 = vunpack.c.0.s8 %v320
        %v323 = vunpack.c.1.s8 %v320
        %v324 = vunpack.c.2.s8 %v320
        %v325 = vunpack.c.3.s8 %v320
        %v326 = vunpack.c.0.s8 %v321
        %v327 = vunpack.c.1.s8 %v321
        %v328 = vunpack.c.2.s8 %v321
        %v329 = vunpack.c.3.s8 %v321
        %vm330 = vcmp.lt.s32.totalorder %v322, 5
        %vm331 = vcmp.lt.s32.totalorder %v323, 5
        %vm332 = vcmp.lt.s32.totalorder %v324, 5
        %vm333 = vcmp.lt.s32.totalorder %v325, 5
        %vm334 = vcmp.lt.s32.totalorder %v326, 5
        %vm335 = vcmp.lt.s32.totalorder %v327, 5
        %vm336 = vcmp.lt.s32.totalorder %v328, 5
        %vm337 = vcmp.lt.s32.totalorder %v329, 5
        %v338 = vld [vmem:[%s315] sm:$0xff]
        %v339 = vld [vmem:[%s315 + $0x8] sm:$0xff]
        %v340 = vld [vmem:[%s315 + $0x10] sm:$0xff]
        %v341 = vld [vmem:[%s315 + $0x18] sm:$0xff]
        %v342 = vld [vmem:[%s315 + $0x20] sm:$0xff]
        %v343 = vld [vmem:[%s315 + $0x28] sm:$0xff]
        %v344 = vld [vmem:[%s315 + $0x30] sm:$0xff]
        %v345 = vld [vmem:[%s315 + $0x38] sm:$0xff]
        %v346 = vld [vmem:[%s1] sm:$0xf]
        %s347 = sld [smem:[#allocation2]]
        %v348 = vstv %s347
        %vm349 = vcmp.eq.s32.totalorder %v322, 1
        %vm350 = vcmp.eq.s32.totalorder %v323, 1
        %vm351 = vcmp.eq.s32.totalorder %v324, 1
        %vm352 = vcmp.eq.s32.totalorder %v325, 1
        %vm353 = vcmp.eq.s32.totalorder %v326, 1
        %vm354 = vcmp.eq.s32.totalorder %v327, 1
        %vm355 = vcmp.eq.s32.totalorder %v328, 1
        %vm356 = vcmp.eq.s32.totalorder %v329, 1
        %s357 = sld [smem:[#allocation2 + $0x80]]
        %v358 = vstv %s357
        %v359 = vsel %vm349, %v358, %v348
        %v360 = vsel %vm350, %v358, %v348
        %v361 = vsel %vm351, %v358, %v348
        %v362 = vsel %vm352, %v358, %v348
        %v363 = vsel %vm353, %v358, %v348
        %v364 = vsel %vm354, %v358, %v348
        %v365 = vsel %vm355, %v358, %v348
        %v366 = vsel %vm356, %v358, %v348
        %vm367 = vcmp.eq.s32.totalorder %v322, 2
        %vm368 = vcmp.eq.s32.totalorder %v323, 2
        %vm369 = vcmp.eq.s32.totalorder %v324, 2
        %vm370 = vcmp.eq.s32.totalorder %v325, 2
        %vm371 = vcmp.eq.s32.totalorder %v326, 2
        %vm372 = vcmp.eq.s32.totalorder %v327, 2
        %vm373 = vcmp.eq.s32.totalorder %v328, 2
        %vm374 = vcmp.eq.s32.totalorder %v329, 2
        %s375 = sld [smem:[#allocation2 + $0x100]]
        %v376 = vstv %s375
        %v377 = vsel %vm367, %v376, %v359
        %v378 = vsel %vm368, %v376, %v360
        %v379 = vsel %vm369, %v376, %v361
        %v380 = vsel %vm370, %v376, %v362
        %v381 = vsel %vm371, %v376, %v363
        %v382 = vsel %vm372, %v376, %v364
        %v383 = vsel %vm373, %v376, %v365
        %v384 = vsel %vm374, %v376, %v366
        %vm385 = vcmp.eq.s32.totalorder %v322, 3
        %vm386 = vcmp.eq.s32.totalorder %v323, 3
        %vm387 = vcmp.eq.s32.totalorder %v324, 3
        %vm388 = vcmp.eq.s32.totalorder %v325, 3
        %vm389 = vcmp.eq.s32.totalorder %v326, 3
        %vm390 = vcmp.eq.s32.totalorder %v327, 3
        %vm391 = vcmp.eq.s32.totalorder %v328, 3
        %vm392 = vcmp.eq.s32.totalorder %v329, 3
        %s393 = sld [smem:[#allocation2 + $0x180]]
        %v394 = vstv %s393
        %v395 = vsel %vm385, %v394, %v377
        %v396 = vsel %vm386, %v394, %v378
        %v397 = vsel %vm387, %v394, %v379
        %v398 = vsel %vm388, %v394, %v380
        %v399 = vsel %vm389, %v394, %v381
        %v400 = vsel %vm390, %v394, %v382
        %v401 = vsel %vm391, %v394, %v383
        %v402 = vsel %vm392, %v394, %v384
        %vm403 = vcmp.eq.s32.totalorder %v322, 4
        %vm404 = vcmp.eq.s32.totalorder %v323, 4
        %vm405 = vcmp.eq.s32.totalorder %v324, 4
        %vm406 = vcmp.eq.s32.totalorder %v325, 4
        %vm407 = vcmp.eq.s32.totalorder %v326, 4
        %vm408 = vcmp.eq.s32.totalorder %v327, 4
        %vm409 = vcmp.eq.s32.totalorder %v328, 4
        %vm410 = vcmp.eq.s32.totalorder %v329, 4
        %s411 = sld [smem:[#allocation2 + $0x200]]
        %v412 = vstv %s411
        %v413 = vsel %vm403, %v412, %v395
        %v414 = vsel %vm404, %v412, %v396
        %v415 = vsel %vm405, %v412, %v397
        %v416 = vsel %vm406, %v412, %v398
        %v417 = vsel %vm407, %v412, %v399
        %v418 = vsel %vm408, %v412, %v400
        %v419 = vsel %vm409, %v412, %v401
        %v420 = vsel %vm410, %v412, %v402
        %422 = vset.pattern.permute.xlu0 0
        %423 = vperm.xlu0 %422, %v338
        %v424 = vpop.permute.xlu0 %423
        %427 = vset.pattern.permute.xlu0 0
        %428 = vperm.xlu0 %427, %v339
        %v429 = vpop.permute.xlu0 %428
        %432 = vset.pattern.permute.xlu0 0
        %433 = vperm.xlu0 %432, %v340
        %v434 = vpop.permute.xlu0 %433
        %437 = vset.pattern.permute.xlu0 0
        %438 = vperm.xlu0 %437, %v341
        %v439 = vpop.permute.xlu0 %438
        %442 = vset.pattern.permute.xlu0 0
        %443 = vperm.xlu0 %442, %v342
        %v444 = vpop.permute.xlu0 %443
        %447 = vset.pattern.permute.xlu0 0
        %448 = vperm.xlu0 %447, %v343
        %v449 = vpop.permute.xlu0 %448
        %452 = vset.pattern.permute.xlu0 0
        %453 = vperm.xlu0 %452, %v344
        %v454 = vpop.permute.xlu0 %453
        %457 = vset.pattern.permute.xlu0 0
        %458 = vperm.xlu0 %457, %v345
        %v459 = vpop.permute.xlu0 %458
        %v461 = vadd.f32 %v413, %v424
        %v462 = vadd.f32 %v414, %v429
        %v463 = vadd.f32 %v415, %v434
        %v464 = vadd.f32 %v416, %v439
        %v465 = vadd.f32 %v417, %v444
        %v466 = vadd.f32 %v418, %v449
        %v467 = vadd.f32 %v419, %v454
        %v468 = vadd.f32 %v420, %v459
        %v469 = vlaneseq
        %v470 = vshrl.u32 %v469, 7
        %v471 = vsub.s32 0, %v470
        %v472 = vrot.slane %v346, %v471
        %v473 = vadd.f32 %v461, %v472
        %v474 = vadd.f32 %v462, %v472
        %v475 = vadd.f32 %v463, %v472
        %v476 = vadd.f32 %v464, %v472
        %v477 = vadd.f32 %v465, %v472
        %v478 = vadd.f32 %v466, %v472
        %v479 = vadd.f32 %v467, %v472
        %v480 = vadd.f32 %v468, %v472
        %vm481 = vcmp.gt.f32.partialorder %v473, 0.0
        %vm482 = vcmp.gt.f32.partialorder %v474, 0.0
        %vm483 = vcmp.gt.f32.partialorder %v475, 0.0
        %vm484 = vcmp.gt.f32.partialorder %v476, 0.0
        %vm485 = vcmp.gt.f32.partialorder %v477, 0.0
        %vm486 = vcmp.gt.f32.partialorder %v478, 0.0
        %vm487 = vcmp.gt.f32.partialorder %v479, 0.0
        %vm488 = vcmp.gt.f32.partialorder %v480, 0.0
        %v489 = vmul.f32 %v473, 0.2
        %v490 = vmul.f32 %v474, 0.2
        %v491 = vmul.f32 %v475, 0.2
        %v492 = vmul.f32 %v476, 0.2
        %v493 = vmul.f32 %v477, 0.2
        %v494 = vmul.f32 %v478, 0.2
        %v495 = vmul.f32 %v479, 0.2
        %v496 = vmul.f32 %v480, 0.2
        %v497 = vsel %vm481, %v473, %v489
        %v498 = vsel %vm482, %v474, %v490
        %v499 = vsel %vm483, %v475, %v491
        %v500 = vsel %vm484, %v476, %v492
        %v501 = vsel %vm485, %v477, %v493
        %v502 = vsel %vm486, %v478, %v494
        %v503 = vsel %vm487, %v479, %v495
        %v504 = vsel %vm488, %v480, %v496
        %v505 = vsel %vm330, %v497, -1e+30
        %v506 = vsel %vm331, %v498, -1e+30
        %v507 = vsel %vm332, %v499, -1e+30
        %v508 = vsel %vm333, %v500, -1e+30
        %v509 = vsel %vm334, %v501, -1e+30
        %v510 = vsel %vm335, %v502, -1e+30
        %v511 = vsel %vm336, %v503, -1e+30
        %v512 = vsel %vm337, %v504, -1e+30
        %513 = vmax.xlane.f32.xlu0 %v505
        %v514 = vpop.xlane.xlu0 %513
        %515 = vmax.xlane.f32.xlu0 %v506
        %v516 = vpop.xlane.xlu0 %515
        %517 = vmax.xlane.f32.xlu0 %v507
        %v518 = vpop.xlane.xlu0 %517
        %519 = vmax.xlane.f32.xlu0 %v508
        %v520 = vpop.xlane.xlu0 %519
        %521 = vmax.xlane.f32.xlu0 %v509
        %v522 = vpop.xlane.xlu0 %521
        %523 = vmax.xlane.f32.xlu0 %v510
        %v524 = vpop.xlane.xlu0 %523
        %525 = vmax.xlane.f32.xlu0 %v511
        %v526 = vpop.xlane.xlu0 %525
        %527 = vmax.xlane.f32.xlu0 %v512
        %v528 = vpop.xlane.xlu0 %527
        %v529 = vsub.f32 %v505, %v514
        %v530 = vsub.f32 %v506, %v516
        %v531 = vsub.f32 %v507, %v518
        %v532 = vsub.f32 %v508, %v520
        %v533 = vsub.f32 %v509, %v522
        %v534 = vsub.f32 %v510, %v524
        %v535 = vsub.f32 %v511, %v526
        %v536 = vsub.f32 %v512, %v528
        %v537 = vmul.f32 %v529, 1.442695
        %v538 = vpow.pop %v537
        %v539 = vmul.f32 %v530, 1.442695
        %v540 = vpow.pop %v539
        %v541 = vmul.f32 %v531, 1.442695
        %v542 = vpow.pop %v541
        %v543 = vmul.f32 %v532, 1.442695
        %v544 = vpow.pop %v543
        %v545 = vmul.f32 %v533, 1.442695
        %v546 = vpow.pop %v545
        %v547 = vmul.f32 %v534, 1.442695
        %v548 = vpow.pop %v547
        %v549 = vmul.f32 %v535, 1.442695
        %v550 = vpow.pop %v549
        %v551 = vmul.f32 %v536, 1.442695
        %v552 = vpow.pop %v551
        %553 = vadd.xlane.f32.xlu0 %v538
        %v554 = vpop.xlane.xlu0 %553
        %555 = vadd.xlane.f32.xlu0 %v540
        %v556 = vpop.xlane.xlu0 %555
        %557 = vadd.xlane.f32.xlu0 %v542
        %v558 = vpop.xlane.xlu0 %557
        %559 = vadd.xlane.f32.xlu0 %v544
        %v560 = vpop.xlane.xlu0 %559
        %561 = vadd.xlane.f32.xlu0 %v546
        %v562 = vpop.xlane.xlu0 %561
        %563 = vadd.xlane.f32.xlu0 %v548
        %v564 = vpop.xlane.xlu0 %563
        %565 = vadd.xlane.f32.xlu0 %v550
        %v566 = vpop.xlane.xlu0 %565
        %567 = vadd.xlane.f32.xlu0 %v552
        %v568 = vpop.xlane.xlu0 %567
        %v569 = vrcp.pop %v554
        %v570 = vmul.f32 1.0, %v569
        %v571 = vrcp.pop %v556
        %v572 = vmul.f32 1.0, %v571
        %v573 = vrcp.pop %v558
        %v574 = vmul.f32 1.0, %v573
        %v575 = vrcp.pop %v560
        %v576 = vmul.f32 1.0, %v575
        %v577 = vrcp.pop %v562
        %v578 = vmul.f32 1.0, %v577
        %v579 = vrcp.pop %v564
        %v580 = vmul.f32 1.0, %v579
        %v581 = vrcp.pop %v566
        %v582 = vmul.f32 1.0, %v581
        %v583 = vrcp.pop %v568
        %v584 = vmul.f32 1.0, %v583
        %v585 = vmul.f32 %v538, %v570
        %v586 = vmul.f32 %v540, %v572
        %v587 = vmul.f32 %v542, %v574
        %v588 = vmul.f32 %v544, %v576
        %v589 = vmul.f32 %v546, %v578
        %v590 = vmul.f32 %v548, %v580
        %v591 = vmul.f32 %v550, %v582
        %v592 = vmul.f32 %v552, %v584
        %v593 = vpack.c.bf16 %v586, %v585
        %v594 = vpack.c.bf16 %v588, %v587
        %v595 = vpack.c.bf16 %v590, %v589
        %v596 = vpack.c.bf16 %v592, %v591
        %v601 = vunpack.c.l.b16 %v593
        %v602 = vunpack.c.h.b16 %v593
        %v603 = vunpack.c.l.b16 %v594
        %v604 = vunpack.c.h.b16 %v594
        %v605 = vunpack.c.l.b16 %v595
        %v606 = vunpack.c.h.b16 %v595
        %v607 = vunpack.c.l.b16 %v596
        %v608 = vunpack.c.h.b16 %v596
        %v609 = vpack.c.b16 %v601, %v601
        %v610 = vpack.c.b16 %v602, %v602
        %v611 = vpack.c.b16 %v603, %v603
        %v612 = vpack.c.b16 %v604, %v604
        %v613 = vpack.c.b16 %v605, %v605
        %v614 = vpack.c.b16 %v606, %v606
        %v615 = vpack.c.b16 %v607, %v607
        %v616 = vpack.c.b16 %v608, %v608
        %625 = vst [vmem:[%s310] sm:$0xf] %v609
        %626 = vst [vmem:[%s310 + $0x4] sm:$0xf] %v610
        %627 = vst [vmem:[%s310 + $0x8] sm:$0xf] %v611
        %628 = vst [vmem:[%s310 + $0xc] sm:$0xf] %v612
        %629 = vst [vmem:[%s310 + $0x10] sm:$0xf] %v613
        %630 = vst [vmem:[%s310 + $0x14] sm:$0xf] %v614
        %631 = vst [vmem:[%s310 + $0x18] sm:$0xf] %v615
        %632 = vst [vmem:[%s310 + $0x1c] sm:$0xf] %v616
        %v633 = vld [vmem:[%s0] sm:$0xff]
        %v634 = vld [vmem:[%s0 + $0x8] sm:$0xff]
        %v635 = vld [vmem:[%s0 + $0x10] sm:$0xff]
        %v636 = vld [vmem:[%s0 + $0x18] sm:$0xff]
        %v637 = vld [vmem:[%s0 + $0x20] sm:$0xff]
        %v638 = vld [vmem:[%s0 + $0x28] sm:$0xff]
        %v639 = vld [vmem:[%s0 + $0x30] sm:$0xff]
        %v640 = vld [vmem:[%s0 + $0x38] sm:$0xff]
        %v641 = vld [vmem:[%s0 + $0x40] sm:$0xff]
        %v642 = vld [vmem:[%s0 + $0x48] sm:$0xff]
        %v643 = vld [vmem:[%s0 + $0x50] sm:$0xff]
        %v644 = vld [vmem:[%s0 + $0x58] sm:$0xff]
        %v645 = vld [vmem:[%s0 + $0x60] sm:$0xff]
        %v646 = vld [vmem:[%s0 + $0x68] sm:$0xff]
        %v647 = vld [vmem:[%s0 + $0x70] sm:$0xff]
        %v648 = vld [vmem:[%s0 + $0x78] sm:$0xff]
        %649 = vmatprep.subr.mxu0 0.0
        %650 = vmatpush1.msra.mxu0 %v633
        %651 = vmatprep.subr.mxu0 0.0
        %652 = vmatpush1.msra.mxu0 %v634
        %653 = vmatprep.subr.mxu0 0.0
        %654 = vmatpush1.msra.mxu0 %v635
        %655 = vmatprep.subr.mxu0 0.0
        %656 = vmatpush1.msra.mxu0 %v636
        %657 = vmatprep.subr.mxu0 0.0
        %658 = vmatpush1.msra.mxu0 %v637
        %659 = vmatprep.subr.mxu0 0.0
        %660 = vmatpush1.msra.mxu0 %v638
        %661 = vmatprep.subr.mxu0 0.0
        %662 = vmatpush1.msra.mxu0 %v639
        %663 = vmatprep.subr.mxu0 0.0
        %664 = vmatpush1.msra.mxu0 %v640
        %665 = vmatprep.subr.mxu0 0.0
        %666 = vmatpush1.msra.mxu0 %v641
        %667 = vmatprep.subr.mxu0 0.0
        %668 = vmatpush1.msra.mxu0 %v642
        %669 = vmatprep.subr.mxu0 0.0
        %670 = vmatpush1.msra.mxu0 %v643
        %671 = vmatprep.subr.mxu0 0.0
        %672 = vmatpush1.msra.mxu0 %v644
        %673 = vmatprep.subr.mxu0 0.0
        %674 = vmatpush1.msra.mxu0 %v645
        %675 = vmatprep.subr.mxu0 0.0
        %676 = vmatpush1.msra.mxu0 %v646
        %677 = vmatprep.subr.mxu0 0.0
        %678 = vmatpush1.msra.mxu0 %v647
        %679 = vmatprep.subr.mxu0 0.0
        %680 = vmatpush1.msra.mxu0 %v648
        %681 = vmatprep.subr.mxu0 0.0
        %682 = vmatpush1.msra.mxu0 0.0
        %683 = vmatprep.subr.mxu0 0.0
        %684 = vmatpush1.msra.mxu0 0.0
        %685 = vmatprep.subr.mxu0 0.0
        %686 = vmatpush1.msra.mxu0 0.0
        %687 = vmatprep.subr.mxu0 0.0
        %688 = vmatpush1.msra.mxu0 0.0
        %689 = vmatprep.subr.mxu0 0.0
        %690 = vmatpush1.msra.mxu0 0.0
        %691 = vmatprep.subr.mxu0 0.0
        %692 = vmatpush1.msra.mxu0 0.0
        %693 = vmatprep.subr.mxu0 0.0
        %694 = vmatpush1.msra.mxu0 0.0
        %695 = vmatprep.subr.mxu0 0.0
        %696 = vmatpush1.msra.mxu0 0.0
        %697 = vmatprep.subr.mxu0 0.0
        %698 = vmatpush1.msra.mxu0 0.0
        %699 = vmatprep.subr.mxu0 0.0
        %700 = vmatpush1.msra.mxu0 0.0
        %701 = vmatprep.subr.mxu0 0.0
        %702 = vmatpush1.msra.mxu0 0.0
        %703 = vmatprep.subr.mxu0 0.0
        %704 = vmatpush1.msra.mxu0 0.0
        %705 = vmatprep.subr.mxu0 0.0
        %706 = vmatpush1.msra.mxu0 0.0
        %707 = vmatprep.subr.mxu0 0.0
        %708 = vmatpush1.msra.mxu0 0.0
        %709 = vmatprep.subr.mxu0 0.0
        %710 = vmatpush1.msra.mxu0 0.0
        %711 = vmatprep.subr.mxu0 0.0
        %712 = vmatpush1.msra.mxu0 0.0
        %713 = vmatprep.mubr.f32.mxu0 0.0
        %714 = vmatmul.mubr.f32.gmra.mrb[0].mxu0 %v585
        %v715 = vpop.f32.mrb[0].mxu0
        %v716 = vadd.f32 0.0, %v715
        %v717 = vpop.f32.mrb[0].mxu0
        %718 = vmatprep.mubr.f32.mxu0 0.0
        %719 = vmatmul.mubr.f32.gmra.mrb[0].mxu0 %v586
        %v720 = vpop.f32.mrb[0].mxu0
        %v721 = vadd.f32 0.0, %v720
        %v722 = vpop.f32.mrb[0].mxu0
        %723 = vmatprep.mubr.f32.mxu0 0.0
        %724 = vmatmul.mubr.f32.gmra.mrb[0].mxu0 %v587
        %v725 = vpop.f32.mrb[0].mxu0
        %v726 = vadd.f32 0.0, %v725
        %v727 = vpop.f32.mrb[0].mxu0
        %728 = vmatprep.mubr.f32.mxu0 0.0
        %729 = vmatmul.mubr.f32.gmra.mrb[0].mxu0 %v588
        %v730 = vpop.f32.mrb[0].mxu0
        %v731 = vadd.f32 0.0, %v730
        %v732 = vpop.f32.mrb[0].mxu0
        %733 = vmatprep.mubr.f32.mxu0 0.0
        %734 = vmatmul.mubr.f32.gmra.mrb[0].mxu0 %v589
        %v735 = vpop.f32.mrb[0].mxu0
        %v736 = vadd.f32 0.0, %v735
        %v737 = vpop.f32.mrb[0].mxu0
        %738 = vmatprep.mubr.f32.mxu0 0.0
        %739 = vmatmul.mubr.f32.gmra.mrb[0].mxu0 %v590
        %v740 = vpop.f32.mrb[0].mxu0
        %v741 = vadd.f32 0.0, %v740
        %v742 = vpop.f32.mrb[0].mxu0
        %743 = vmatprep.mubr.f32.mxu0 0.0
        %744 = vmatmul.mubr.f32.gmra.mrb[0].mxu0 %v591
        %v745 = vpop.f32.mrb[0].mxu0
        %v746 = vadd.f32 0.0, %v745
        %v747 = vpop.f32.mrb[0].mxu0
        %748 = vmatprep.mubr.f32.mxu0 0.0
        %749 = vmatmul.mubr.f32.gmra.mrb[0].mxu0 %v592
        %v750 = vpop.f32.mrb[0].mxu0
        %v751 = vadd.f32 0.0, %v750
        %v752 = vpop.f32.mrb[0].mxu0
        %753 = vdwg.mxu0
        %vm754 = vcmask 261120
        %755 = vst.msk [vmem:[%s303] sm:$0xff] %vm754, %v716
        %756 = vst.msk [vmem:[%s303 + $0x8] sm:$0xff] %vm754, %v721
        %757 = vst.msk [vmem:[%s303 + $0x10] sm:$0xff] %vm754, %v726
        %758 = vst.msk [vmem:[%s303 + $0x18] sm:$0xff] %vm754, %v731
        %759 = vst.msk [vmem:[%s303 + $0x20] sm:$0xff] %vm754, %v736
        %760 = vst.msk [vmem:[%s303 + $0x28] sm:$0xff] %vm754, %v741
        %761 = vst.msk [vmem:[%s303 + $0x30] sm:$0xff] %vm754, %v746
        %762 = vst.msk [vmem:[%s303 + $0x38] sm:$0xff] %vm754, %v751
        %s763 = sld [smem:[#allocation2 + $0x1]]
        %v764 = vstv %s763
        %s765 = sld [smem:[#allocation2 + $0x81]]
        %v766 = vstv %s765
        %v767 = vsel %vm349, %v766, %v764
        %v768 = vsel %vm350, %v766, %v764
        %v769 = vsel %vm351, %v766, %v764
        %v770 = vsel %vm352, %v766, %v764
        %v771 = vsel %vm353, %v766, %v764
        %v772 = vsel %vm354, %v766, %v764
        %v773 = vsel %vm355, %v766, %v764
        %v774 = vsel %vm356, %v766, %v764
        %s775 = sld [smem:[#allocation2 + $0x101]]
        %v776 = vstv %s775
        %v777 = vsel %vm367, %v776, %v767
        %v778 = vsel %vm368, %v776, %v768
        %v779 = vsel %vm369, %v776, %v769
        %v780 = vsel %vm370, %v776, %v770
        %v781 = vsel %vm371, %v776, %v771
        %v782 = vsel %vm372, %v776, %v772
        %v783 = vsel %vm373, %v776, %v773
        %v784 = vsel %vm374, %v776, %v774
        %s785 = sld [smem:[#allocation2 + $0x181]]
        %v786 = vstv %s785
        %v787 = vsel %vm385, %v786, %v777
        %v788 = vsel %vm386, %v786, %v778
        %v789 = vsel %vm387, %v786, %v779
        %v790 = vsel %vm388, %v786, %v780
        %v791 = vsel %vm389, %v786, %v781
        %v792 = vsel %vm390, %v786, %v782
        %v793 = vsel %vm391, %v786, %v783
        %v794 = vsel %vm392, %v786, %v784
        %s795 = sld [smem:[#allocation2 + $0x201]]
        %v796 = vstv %s795
        %v797 = vsel %vm403, %v796, %v787
        %v798 = vsel %vm404, %v796, %v788
        %v799 = vsel %vm405, %v796, %v789
        %v800 = vsel %vm406, %v796, %v790
        %v801 = vsel %vm407, %v796, %v791
        %v802 = vsel %vm408, %v796, %v792
        %v803 = vsel %vm409, %v796, %v793
        %v804 = vsel %vm410, %v796, %v794
        %805 = vset.pattern.permute.xlu0 1
        %806 = vperm.xlu0 %805, %v338
        %v807 = vpop.permute.xlu0 %806
        %809 = vset.pattern.permute.xlu0 1
        %810 = vperm.xlu0 %809, %v339
        %v811 = vpop.permute.xlu0 %810
        %813 = vset.pattern.permute.xlu0 1
        %814 = vperm.xlu0 %813, %v340
        %v815 = vpop.permute.xlu0 %814
        %817 = vset.pattern.permute.xlu0 1
        %818 = vperm.xlu0 %817, %v341
        %v819 = vpop.permute.xlu0 %818
        %821 = vset.pattern.permute.xlu0 1
        %822 = vperm.xlu0 %821, %v342
        %v823 = vpop.permute.xlu0 %822
        %825 = vset.pattern.permute.xlu0 1
        %826 = vperm.xlu0 %825, %v343
        %v827 = vpop.permute.xlu0 %826
        %829 = vset.pattern.permute.xlu0 1
        %830 = vperm.xlu0 %829, %v344
        %v831 = vpop.permute.xlu0 %830
        %833 = vset.pattern.permute.xlu0 1
        %834 = vperm.xlu0 %833, %v345
        %v835 = vpop.permute.xlu0 %834
        %v837 = vadd.f32 %v797, %v807
        %v838 = vadd.f32 %v798, %v811
        %v839 = vadd.f32 %v799, %v815
        %v840 = vadd.f32 %v800, %v819
        %v841 = vadd.f32 %v801, %v823
        %v842 = vadd.f32 %v802, %v827
        %v843 = vadd.f32 %v803, %v831
        %v844 = vadd.f32 %v804, %v835
        %v845 = vlaneseq
        %v846 = vshrl.u32 %v845, 7
        %v847 = vsub.s32 1, %v846
        %v848 = vrot.slane %v346, %v847
        %v849 = vadd.f32 %v837, %v848
        %v850 = vadd.f32 %v838, %v848
        %v851 = vadd.f32 %v839, %v848
        %v852 = vadd.f32 %v840, %v848
        %v853 = vadd.f32 %v841, %v848
        %v854 = vadd.f32 %v842, %v848
        %v855 = vadd.f32 %v843, %v848
        %v856 = vadd.f32 %v844, %v848
        %vm857 = vcmp.gt.f32.partialorder %v849, 0.0
        %vm858 = vcmp.gt.f32.partialorder %v850, 0.0
        %vm859 = vcmp.gt.f32.partialorder %v851, 0.0
        %vm860 = vcmp.gt.f32.partialorder %v852, 0.0
        %vm861 = vcmp.gt.f32.partialorder %v853, 0.0
        %vm862 = vcmp.gt.f32.partialorder %v854, 0.0
        %vm863 = vcmp.gt.f32.partialorder %v855, 0.0
        %vm864 = vcmp.gt.f32.partialorder %v856, 0.0
        %v865 = vmul.f32 %v849, 0.2
        %v866 = vmul.f32 %v850, 0.2
        %v867 = vmul.f32 %v851, 0.2
        %v868 = vmul.f32 %v852, 0.2
        %v869 = vmul.f32 %v853, 0.2
        %v870 = vmul.f32 %v854, 0.2
        %v871 = vmul.f32 %v855, 0.2
        %v872 = vmul.f32 %v856, 0.2
        %v873 = vsel %vm857, %v849, %v865
        %v874 = vsel %vm858, %v850, %v866
        %v875 = vsel %vm859, %v851, %v867
        %v876 = vsel %vm860, %v852, %v868
        %v877 = vsel %vm861, %v853, %v869
        %v878 = vsel %vm862, %v854, %v870
        %v879 = vsel %vm863, %v855, %v871
        %v880 = vsel %vm864, %v856, %v872
        %v881 = vsel %vm330, %v873, -1e+30
        %v882 = vsel %vm331, %v874, -1e+30
        %v883 = vsel %vm332, %v875, -1e+30
        %v884 = vsel %vm333, %v876, -1e+30
        %v885 = vsel %vm334, %v877, -1e+30
        %v886 = vsel %vm335, %v878, -1e+30
        %v887 = vsel %vm336, %v879, -1e+30
        %v888 = vsel %vm337, %v880, -1e+30
        %889 = vmax.xlane.f32.xlu0 %v881
        %v890 = vpop.xlane.xlu0 %889
        %891 = vmax.xlane.f32.xlu0 %v882
        %v892 = vpop.xlane.xlu0 %891
        %893 = vmax.xlane.f32.xlu0 %v883
        %v894 = vpop.xlane.xlu0 %893
        %895 = vmax.xlane.f32.xlu0 %v884
        %v896 = vpop.xlane.xlu0 %895
        %897 = vmax.xlane.f32.xlu0 %v885
        %v898 = vpop.xlane.xlu0 %897
        %899 = vmax.xlane.f32.xlu0 %v886
        %v900 = vpop.xlane.xlu0 %899
        %901 = vmax.xlane.f32.xlu0 %v887
        %v902 = vpop.xlane.xlu0 %901
        %903 = vmax.xlane.f32.xlu0 %v888
        %v904 = vpop.xlane.xlu0 %903
        %v905 = vsub.f32 %v881, %v890
        %v906 = vsub.f32 %v882, %v892
        %v907 = vsub.f32 %v883, %v894
        %v908 = vsub.f32 %v884, %v896
        %v909 = vsub.f32 %v885, %v898
        %v910 = vsub.f32 %v886, %v900
        %v911 = vsub.f32 %v887, %v902
        %v912 = vsub.f32 %v888, %v904
        %v913 = vmul.f32 %v905, 1.442695
        %v914 = vpow.pop %v913
        %v915 = vmul.f32 %v906, 1.442695
        %v916 = vpow.pop %v915
        %v917 = vmul.f32 %v907, 1.442695
        %v918 = vpow.pop %v917
        %v919 = vmul.f32 %v908, 1.442695
        %v920 = vpow.pop %v919
        %v921 = vmul.f32 %v909, 1.442695
        %v922 = vpow.pop %v921
        %v923 = vmul.f32 %v910, 1.442695
        %v924 = vpow.pop %v923
        %v925 = vmul.f32 %v911, 1.442695
        %v926 = vpow.pop %v925
        %v927 = vmul.f32 %v912, 1.442695
        %v928 = vpow.pop %v927
        %929 = vadd.xlane.f32.xlu0 %v914
        %v930 = vpop.xlane.xlu0 %929
        %931 = vadd.xlane.f32.xlu0 %v916
        %v932 = vpop.xlane.xlu0 %931
        %933 = vadd.xlane.f32.xlu0 %v918
        %v934 = vpop.xlane.xlu0 %933
        %935 = vadd.xlane.f32.xlu0 %v920
        %v936 = vpop.xlane.xlu0 %935
        %937 = vadd.xlane.f32.xlu0 %v922
        %v938 = vpop.xlane.xlu0 %937
        %939 = vadd.xlane.f32.xlu0 %v924
        %v940 = vpop.xlane.xlu0 %939
        %941 = vadd.xlane.f32.xlu0 %v926
        %v942 = vpop.xlane.xlu0 %941
        %943 = vadd.xlane.f32.xlu0 %v928
        %v944 = vpop.xlane.xlu0 %943
        %v945 = vrcp.pop %v930
        %v946 = vmul.f32 1.0, %v945
        %v947 = vrcp.pop %v932
        %v948 = vmul.f32 1.0, %v947
        %v949 = vrcp.pop %v934
        %v950 = vmul.f32 1.0, %v949
        %v951 = vrcp.pop %v936
        %v952 = vmul.f32 1.0, %v951
        %v953 = vrcp.pop %v938
        %v954 = vmul.f32 1.0, %v953
        %v955 = vrcp.pop %v940
        %v956 = vmul.f32 1.0, %v955
        %v957 = vrcp.pop %v942
        %v958 = vmul.f32 1.0, %v957
        %v959 = vrcp.pop %v944
        %v960 = vmul.f32 1.0, %v959
        %v961 = vmul.f32 %v914, %v946
        %v962 = vmul.f32 %v916, %v948
        %v963 = vmul.f32 %v918, %v950
        %v964 = vmul.f32 %v920, %v952
        %v965 = vmul.f32 %v922, %v954
        %v966 = vmul.f32 %v924, %v956
        %v967 = vmul.f32 %v926, %v958
        %v968 = vmul.f32 %v928, %v960
        %v969 = vpack.c.bf16 %v962, %v961
        %v970 = vpack.c.bf16 %v964, %v963
        %v971 = vpack.c.bf16 %v966, %v965
        %v972 = vpack.c.bf16 %v968, %v967
        %v977 = vunpack.c.l.b16 %v969
        %v978 = vunpack.c.h.b16 %v969
        %v979 = vunpack.c.l.b16 %v970
        %v980 = vunpack.c.h.b16 %v970
        %v981 = vunpack.c.l.b16 %v971
        %v982 = vunpack.c.h.b16 %v971
        %v983 = vunpack.c.l.b16 %v972
        %v984 = vunpack.c.h.b16 %v972
        %v985 = vpack.c.b16 %v977, %v977
        %v986 = vpack.c.b16 %v978, %v978
        %v987 = vpack.c.b16 %v979, %v979
        %v988 = vpack.c.b16 %v980, %v980
        %v989 = vpack.c.b16 %v981, %v981
        %v990 = vpack.c.b16 %v982, %v982
        %v991 = vpack.c.b16 %v983, %v983
        %v992 = vpack.c.b16 %v984, %v984
        %s1001 = scalar_lea.vmem %s310, 32 [#allocation8]
        %1002 = vst [vmem:[%s1001] sm:$0xf] %v985
        %1003 = vst [vmem:[%s1001 + $0x4] sm:$0xf] %v986
        %1004 = vst [vmem:[%s1001 + $0x8] sm:$0xf] %v987
        %1005 = vst [vmem:[%s1001 + $0xc] sm:$0xf] %v988
        %1006 = vst [vmem:[%s1001 + $0x10] sm:$0xf] %v989
        %1007 = vst [vmem:[%s1001 + $0x14] sm:$0xf] %v990
        %1008 = vst [vmem:[%s1001 + $0x18] sm:$0xf] %v991
        %1009 = vst [vmem:[%s1001 + $0x1c] sm:$0xf] %v992
        %v1010 = vld [vmem:[%s0] sm:$0xff]
        %v1011 = vld [vmem:[%s0 + $0x8] sm:$0xff]
        %v1012 = vld [vmem:[%s0 + $0x10] sm:$0xff]
        %v1013 = vld [vmem:[%s0 + $0x18] sm:$0xff]
        %v1014 = vld [vmem:[%s0 + $0x20] sm:$0xff]
        %v1015 = vld [vmem:[%s0 + $0x28] sm:$0xff]
        %v1016 = vld [vmem:[%s0 + $0x30] sm:$0xff]
        %v1017 = vld [vmem:[%s0 + $0x38] sm:$0xff]
        %v1018 = vld [vmem:[%s0 + $0x40] sm:$0xff]
        %v1019 = vld [vmem:[%s0 + $0x48] sm:$0xff]
        %v1020 = vld [vmem:[%s0 + $0x50] sm:$0xff]
        %v1021 = vld [vmem:[%s0 + $0x58] sm:$0xff]
        %v1022 = vld [vmem:[%s0 + $0x60] sm:$0xff]
        %v1023 = vld [vmem:[%s0 + $0x68] sm:$0xff]
        %v1024 = vld [vmem:[%s0 + $0x70] sm:$0xff]
        %v1025 = vld [vmem:[%s0 + $0x78] sm:$0xff]
        %1042 = vrot.lane.b32.xlu0 %v1010, 96
        %v1043 = vpop.permute.xlu0 %1042
        %1044 = vrot.lane.b32.xlu0 %v1011, 96
        %v1045 = vpop.permute.xlu0 %1044
        %1046 = vrot.lane.b32.xlu0 %v1012, 96
        %v1047 = vpop.permute.xlu0 %1046
        %1048 = vrot.lane.b32.xlu0 %v1013, 96
        %v1049 = vpop.permute.xlu0 %1048
        %1050 = vrot.lane.b32.xlu0 %v1014, 96
        %v1051 = vpop.permute.xlu0 %1050
        %1052 = vrot.lane.b32.xlu0 %v1015, 96
        %v1053 = vpop.permute.xlu0 %1052
        %1054 = vrot.lane.b32.xlu0 %v1016, 96
        %v1055 = vpop.permute.xlu0 %1054
        %1056 = vrot.lane.b32.xlu0 %v1017, 96
        %v1057 = vpop.permute.xlu0 %1056
        %1058 = vrot.lane.b32.xlu0 %v1018, 96
        %v1059 = vpop.permute.xlu0 %1058
        %1060 = vrot.lane.b32.xlu0 %v1019, 96
        %v1061 = vpop.permute.xlu0 %1060
        %1062 = vrot.lane.b32.xlu0 %v1020, 96
        %v1063 = vpop.permute.xlu0 %1062
        %1064 = vrot.lane.b32.xlu0 %v1021, 96
        %v1065 = vpop.permute.xlu0 %1064
        %1066 = vrot.lane.b32.xlu0 %v1022, 96
        %v1067 = vpop.permute.xlu0 %1066
        %1068 = vrot.lane.b32.xlu0 %v1023, 96
        %v1069 = vpop.permute.xlu0 %1068
        %1070 = vrot.lane.b32.xlu0 %v1024, 96
        %v1071 = vpop.permute.xlu0 %1070
        %1072 = vrot.lane.b32.xlu0 %v1025, 96
        %v1073 = vpop.permute.xlu0 %1072
        %1090 = vmatprep.subr.mxu0 0.0
        %1091 = vmatpush1.msra.mxu0 %v1043
        %1092 = vmatprep.subr.mxu0 0.0
        %1093 = vmatpush1.msra.mxu0 %v1045
        %1094 = vmatprep.subr.mxu0 0.0
        %1095 = vmatpush1.msra.mxu0 %v1047
        %1096 = vmatprep.subr.mxu0 0.0
        %1097 = vmatpush1.msra.mxu0 %v1049
        %1098 = vmatprep.subr.mxu0 0.0
        %1099 = vmatpush1.msra.mxu0 %v1051
        %1100 = vmatprep.subr.mxu0 0.0
        %1101 = vmatpush1.msra.mxu0 %v1053
        %1102 = vmatprep.subr.mxu0 0.0
        %1103 = vmatpush1.msra.mxu0 %v1055
        %1104 = vmatprep.subr.mxu0 0.0
        %1105 = vmatpush1.msra.mxu0 %v1057
        %1106 = vmatprep.subr.mxu0 0.0
        %1107 = vmatpush1.msra.mxu0 %v1059
        %1108 = vmatprep.subr.mxu0 0.0
        %1109 = vmatpush1.msra.mxu0 %v1061
        %1110 = vmatprep.subr.mxu0 0.0
        %1111 = vmatpush1.msra.mxu0 %v1063
        %1112 = vmatprep.subr.mxu0 0.0
        %1113 = vmatpush1.msra.mxu0 %v1065
        %1114 = vmatprep.subr.mxu0 0.0
        %1115 = vmatpush1.msra.mxu0 %v1067
        %1116 = vmatprep.subr.mxu0 0.0
        %1117 = vmatpush1.msra.mxu0 %v1069
        %1118 = vmatprep.subr.mxu0 0.0
        %1119 = vmatpush1.msra.mxu0 %v1071
        %1120 = vmatprep.subr.mxu0 0.0
        %1121 = vmatpush1.msra.mxu0 %v1073
        %1122 = vmatprep.subr.mxu0 0.0
        %1123 = vmatpush1.msra.mxu0 0.0
        %1124 = vmatprep.subr.mxu0 0.0
        %1125 = vmatpush1.msra.mxu0 0.0
        %1126 = vmatprep.subr.mxu0 0.0
        %1127 = vmatpush1.msra.mxu0 0.0
        %1128 = vmatprep.subr.mxu0 0.0
        %1129 = vmatpush1.msra.mxu0 0.0
        %1130 = vmatprep.subr.mxu0 0.0
        %1131 = vmatpush1.msra.mxu0 0.0
        %1132 = vmatprep.subr.mxu0 0.0
        %1133 = vmatpush1.msra.mxu0 0.0
        %1134 = vmatprep.subr.mxu0 0.0
        %1135 = vmatpush1.msra.mxu0 0.0
        %1136 = vmatprep.subr.mxu0 0.0
        %1137 = vmatpush1.msra.mxu0 0.0
        %1138 = vmatprep.subr.mxu0 0.0
        %1139 = vmatpush1.msra.mxu0 0.0
        %1140 = vmatprep.subr.mxu0 0.0
        %1141 = vmatpush1.msra.mxu0 0.0
        %1142 = vmatprep.subr.mxu0 0.0
        %1143 = vmatpush1.msra.mxu0 0.0
        %1144 = vmatprep.subr.mxu0 0.0
        %1145 = vmatpush1.msra.mxu0 0.0
        %1146 = vmatprep.subr.mxu0 0.0
        %1147 = vmatpush1.msra.mxu0 0.0
        %1148 = vmatprep.subr.mxu0 0.0
        %1149 = vmatpush1.msra.mxu0 0.0
        %1150 = vmatprep.subr.mxu0 0.0
        %1151 = vmatpush1.msra.mxu0 0.0
        %1152 = vmatprep.subr.mxu0 0.0
        %1153 = vmatpush1.msra.mxu0 0.0
        %1154 = vmatprep.mubr.f32.mxu0 0.0
        %1155 = vmatmul.mubr.f32.gmra.mrb[0].mxu0 %v961
        %v1156 = vpop.f32.mrb[0].mxu0
        %v1157 = vadd.f32 0.0, %v1156
        %v1158 = vpop.f32.mrb[0].mxu0
        %1159 = vmatprep.mubr.f32.mxu0 0.0
        %1160 = vmatmul.mubr.f32.gmra.mrb[0].mxu0 %v962
        %v1161 = vpop.f32.mrb[0].mxu0
        %v1162 = vadd.f32 0.0, %v1161
        %v1163 = vpop.f32.mrb[0].mxu0
        %1164 = vmatprep.mubr.f32.mxu0 0.0
        %1165 = vmatmul.mubr.f32.gmra.mrb[0].mxu0 %v963
        %v1166 = vpop.f32.mrb[0].mxu0
        %v1167 = vadd.f32 0.0, %v1166
        %v1168 = vpop.f32.mrb[0].mxu0
        %1169 = vmatprep.mubr.f32.mxu0 0.0
        %1170 = vmatmul.mubr.f32.gmra.mrb[0].mxu0 %v964
        %v1171 = vpop.f32.mrb[0].mxu0
        %v1172 = vadd.f32 0.0, %v1171
        %v1173 = vpop.f32.mrb[0].mxu0
        %1174 = vmatprep.mubr.f32.mxu0 0.0
        %1175 = vmatmul.mubr.f32.gmra.mrb[0].mxu0 %v965
        %v1176 = vpop.f32.mrb[0].mxu0
        %v1177 = vadd.f32 0.0, %v1176
        %v1178 = vpop.f32.mrb[0].mxu0
        %1179 = vmatprep.mubr.f32.mxu0 0.0
        %1180 = vmatmul.mubr.f32.gmra.mrb[0].mxu0 %v966
        %v1181 = vpop.f32.mrb[0].mxu0
        %v1182 = vadd.f32 0.0, %v1181
        %v1183 = vpop.f32.mrb[0].mxu0
        %1184 = vmatprep.mubr.f32.mxu0 0.0
        %1185 = vmatmul.mubr.f32.gmra.mrb[0].mxu0 %v967
        %v1186 = vpop.f32.mrb[0].mxu0
        %v1187 = vadd.f32 0.0, %v1186
        %v1188 = vpop.f32.mrb[0].mxu0
        %1189 = vmatprep.mubr.f32.mxu0 0.0
        %1190 = vmatmul.mubr.f32.gmra.mrb[0].mxu0 %v968
        %v1191 = vpop.f32.mrb[0].mxu0
        %v1192 = vadd.f32 0.0, %v1191
        %v1193 = vpop.f32.mrb[0].mxu0
        %1194 = vdwg.mxu0
        %1203 = vrot.lane.b32.xlu0 %v1157, 32
        %v1204 = vpop.permute.xlu0 %1203
        %1205 = vrot.lane.b32.xlu0 %v1162, 32
        %v1206 = vpop.permute.xlu0 %1205
        %1207 = vrot.lane.b32.xlu0 %v1167, 32
        %v1208 = vpop.permute.xlu0 %1207
        %1209 = vrot.lane.b32.xlu0 %v1172, 32
        %v1210 = vpop.permute.xlu0 %1209
        %1211 = vrot.lane.b32.xlu0 %v1177, 32
        %v1212 = vpop.permute.xlu0 %1211
        %1213 = vrot.lane.b32.xlu0 %v1182, 32
        %v1214 = vpop.permute.xlu0 %1213
        %1215 = vrot.lane.b32.xlu0 %v1187, 32
        %v1216 = vpop.permute.xlu0 %1215
        %1217 = vrot.lane.b32.xlu0 %v1192, 32
        %v1218 = vpop.permute.xlu0 %1217
        %vm1227 = vcmask 523520
        %1228 = vst.msk [vmem:[%s303] sm:$0xff] %vm1227, %v1204
        %1229 = vst.msk [vmem:[%s303 + $0x8] sm:$0xff] %vm1227, %v1206
        %1230 = vst.msk [vmem:[%s303 + $0x10] sm:$0xff] %vm1227, %v1208
        %1231 = vst.msk [vmem:[%s303 + $0x18] sm:$0xff] %vm1227, %v1210
        %1232 = vst.msk [vmem:[%s303 + $0x20] sm:$0xff] %vm1227, %v1212
        %1233 = vst.msk [vmem:[%s303 + $0x28] sm:$0xff] %vm1227, %v1214
        %1234 = vst.msk [vmem:[%s303 + $0x30] sm:$0xff] %vm1227, %v1216
        %1235 = vst.msk [vmem:[%s303 + $0x38] sm:$0xff] %vm1227, %v1218
        %s1236 = sld [smem:[#allocation2 + $0x2]]
        %v1237 = vstv %s1236
        %s1238 = sld [smem:[#allocation2 + $0x82]]
        %v1239 = vstv %s1238
        %v1240 = vsel %vm349, %v1239, %v1237
        %v1241 = vsel %vm350, %v1239, %v1237
        %v1242 = vsel %vm351, %v1239, %v1237
        %v1243 = vsel %vm352, %v1239, %v1237
        %v1244 = vsel %vm353, %v1239, %v1237
        %v1245 = vsel %vm354, %v1239, %v1237
        %v1246 = vsel %vm355, %v1239, %v1237
        %v1247 = vsel %vm356, %v1239, %v1237
        %s1248 = sld [smem:[#allocation2 + $0x102]]
        %v1249 = vstv %s1248
        %v1250 = vsel %vm367, %v1249, %v1240
        %v1251 = vsel %vm368, %v1249, %v1241
        %v1252 = vsel %vm369, %v1249, %v1242
        %v1253 = vsel %vm370, %v1249, %v1243
        %v1254 = vsel %vm371, %v1249, %v1244
        %v1255 = vsel %vm372, %v1249, %v1245
        %v1256 = vsel %vm373, %v1249, %v1246
        %v1257 = vsel %vm374, %v1249, %v1247
        %s1258 = sld [smem:[#allocation2 + $0x182]]
        %v1259 = vstv %s1258
        %v1260 = vsel %vm385, %v1259, %v1250
        %v1261 = vsel %vm386, %v1259, %v1251
        %v1262 = vsel %vm387, %v1259, %v1252
        %v1263 = vsel %vm388, %v1259, %v1253
        %v1264 = vsel %vm389, %v1259, %v1254
        %v1265 = vsel %vm390, %v1259, %v1255
        %v1266 = vsel %vm391, %v1259, %v1256
        %v1267 = vsel %vm392, %v1259, %v1257
        %s1268 = sld [smem:[#allocation2 + $0x202]]
        %v1269 = vstv %s1268
        %v1270 = vsel %vm403, %v1269, %v1260
        %v1271 = vsel %vm404, %v1269, %v1261
        %v1272 = vsel %vm405, %v1269, %v1262
        %v1273 = vsel %vm406, %v1269, %v1263
        %v1274 = vsel %vm407, %v1269, %v1264
        %v1275 = vsel %vm408, %v1269, %v1265
        %v1276 = vsel %vm409, %v1269, %v1266
        %v1277 = vsel %vm410, %v1269, %v1267
        %1278 = vset.pattern.permute.xlu0 2
        %1279 = vperm.xlu0 %1278, %v338
        %v1280 = vpop.permute.xlu0 %1279
        %1282 = vset.pattern.permute.xlu0 2
        %1283 = vperm.xlu0 %1282, %v339
        %v1284 = vpop.permute.xlu0 %1283
        %1286 = vset.pattern.permute.xlu0 2
        %1287 = vperm.xlu0 %1286, %v340
        %v1288 = vpop.permute.xlu0 %1287
        %1290 = vset.pattern.permute.xlu0 2
        %1291 = vperm.xlu0 %1290, %v341
        %v1292 = vpop.permute.xlu0 %1291
        %1294 = vset.pattern.permute.xlu0 2
        %1295 = vperm.xlu0 %1294, %v342
        %v1296 = vpop.permute.xlu0 %1295
        %1298 = vset.pattern.permute.xlu0 2
        %1299 = vperm.xlu0 %1298, %v343
        %v1300 = vpop.permute.xlu0 %1299
        %1302 = vset.pattern.permute.xlu0 2
        %1303 = vperm.xlu0 %1302, %v344
        %v1304 = vpop.permute.xlu0 %1303
        %1306 = vset.pattern.permute.xlu0 2
        %1307 = vperm.xlu0 %1306, %v345
        %v1308 = vpop.permute.xlu0 %1307
        %v1310 = vadd.f32 %v1270, %v1280
        %v1311 = vadd.f32 %v1271, %v1284
        %v1312 = vadd.f32 %v1272, %v1288
        %v1313 = vadd.f32 %v1273, %v1292
        %v1314 = vadd.f32 %v1274, %v1296
        %v1315 = vadd.f32 %v1275, %v1300
        %v1316 = vadd.f32 %v1276, %v1304
        %v1317 = vadd.f32 %v1277, %v1308
        %v1318 = vlaneseq
        %v1319 = vshrl.u32 %v1318, 7
        %v1320 = vsub.s32 2, %v1319
        %v1321 = vrot.slane %v346, %v1320
        %v1322 = vadd.f32 %v1310, %v1321
        %v1323 = vadd.f32 %v1311, %v1321
        %v1324 = vadd.f32 %v1312, %v1321
        %v1325 = vadd.f32 %v1313, %v1321
        %v1326 = vadd.f32 %v1314, %v1321
        %v1327 = vadd.f32 %v1315, %v1321
        %v1328 = vadd.f32 %v1316, %v1321
        %v1329 = vadd.f32 %v1317, %v1321
        %vm1330 = vcmp.gt.f32.partialorder %v1322, 0.0
        %vm1331 = vcmp.gt.f32.partialorder %v1323, 0.0
        %vm1332 = vcmp.gt.f32.partialorder %v1324, 0.0
        %vm1333 = vcmp.gt.f32.partialorder %v1325, 0.0
        %vm1334 = vcmp.gt.f32.partialorder %v1326, 0.0
        %vm1335 = vcmp.gt.f32.partialorder %v1327, 0.0
        %vm1336 = vcmp.gt.f32.partialorder %v1328, 0.0
        %vm1337 = vcmp.gt.f32.partialorder %v1329, 0.0
        %v1338 = vmul.f32 %v1322, 0.2
        %v1339 = vmul.f32 %v1323, 0.2
        %v1340 = vmul.f32 %v1324, 0.2
        %v1341 = vmul.f32 %v1325, 0.2
        %v1342 = vmul.f32 %v1326, 0.2
        %v1343 = vmul.f32 %v1327, 0.2
        %v1344 = vmul.f32 %v1328, 0.2
        %v1345 = vmul.f32 %v1329, 0.2
        %v1346 = vsel %vm1330, %v1322, %v1338
        %v1347 = vsel %vm1331, %v1323, %v1339
        %v1348 = vsel %vm1332, %v1324, %v1340
        %v1349 = vsel %vm1333, %v1325, %v1341
        %v1350 = vsel %vm1334, %v1326, %v1342
        %v1351 = vsel %vm1335, %v1327, %v1343
        %v1352 = vsel %vm1336, %v1328, %v1344
        %v1353 = vsel %vm1337, %v1329, %v1345
        %v1354 = vsel %vm330, %v1346, -1e+30
        %v1355 = vsel %vm331, %v1347, -1e+30
        %v1356 = vsel %vm332, %v1348, -1e+30
        %v1357 = vsel %vm333, %v1349, -1e+30
        %v1358 = vsel %vm334, %v1350, -1e+30
        %v1359 = vsel %vm335, %v1351, -1e+30
        %v1360 = vsel %vm336, %v1352, -1e+30
        %v1361 = vsel %vm337, %v1353, -1e+30
        %1362 = vmax.xlane.f32.xlu0 %v1354
        %v1363 = vpop.xlane.xlu0 %1362
        %1364 = vmax.xlane.f32.xlu0 %v1355
        %v1365 = vpop.xlane.xlu0 %1364
        %1366 = vmax.xlane.f32.xlu0 %v1356
        %v1367 = vpop.xlane.xlu0 %1366
        %1368 = vmax.xlane.f32.xlu0 %v1357
        %v1369 = vpop.xlane.xlu0 %1368
        %1370 = vmax.xlane.f32.xlu0 %v1358
        %v1371 = vpop.xlane.xlu0 %1370
        %1372 = vmax.xlane.f32.xlu0 %v1359
        %v1373 = vpop.xlane.xlu0 %1372
        %1374 = vmax.xlane.f32.xlu0 %v1360
        %v1375 = vpop.xlane.xlu0 %1374
        %1376 = vmax.xlane.f32.xlu0 %v1361
        %v1377 = vpop.xlane.xlu0 %1376
        %v1378 = vsub.f32 %v1354, %v1363
        %v1379 = vsub.f32 %v1355, %v1365
        %v1380 = vsub.f32 %v1356, %v1367
        %v1381 = vsub.f32 %v1357, %v1369
        %v1382 = vsub.f32 %v1358, %v1371
        %v1383 = vsub.f32 %v1359, %v1373
        %v1384 = vsub.f32 %v1360, %v1375
        %v1385 = vsub.f32 %v1361, %v1377
        %v1386 = vmul.f32 %v1378, 1.442695
        %v1387 = vpow.pop %v1386
        %v1388 = vmul.f32 %v1379, 1.442695
        %v1389 = vpow.pop %v1388
        %v1390 = vmul.f32 %v1380, 1.442695
        %v1391 = vpow.pop %v1390
        %v1392 = vmul.f32 %v1381, 1.442695
        %v1393 = vpow.pop %v1392
        %v1394 = vmul.f32 %v1382, 1.442695
        %v1395 = vpow.pop %v1394
        %v1396 = vmul.f32 %v1383, 1.442695
        %v1397 = vpow.pop %v1396
        %v1398 = vmul.f32 %v1384, 1.442695
        %v1399 = vpow.pop %v1398
        %v1400 = vmul.f32 %v1385, 1.442695
        %v1401 = vpow.pop %v1400
        %1402 = vadd.xlane.f32.xlu0 %v1387
        %v1403 = vpop.xlane.xlu0 %1402
        %1404 = vadd.xlane.f32.xlu0 %v1389
        %v1405 = vpop.xlane.xlu0 %1404
        %1406 = vadd.xlane.f32.xlu0 %v1391
        %v1407 = vpop.xlane.xlu0 %1406
        %1408 = vadd.xlane.f32.xlu0 %v1393
        %v1409 = vpop.xlane.xlu0 %1408
        %1410 = vadd.xlane.f32.xlu0 %v1395
        %v1411 = vpop.xlane.xlu0 %1410
        %1412 = vadd.xlane.f32.xlu0 %v1397
        %v1413 = vpop.xlane.xlu0 %1412
        %1414 = vadd.xlane.f32.xlu0 %v1399
        %v1415 = vpop.xlane.xlu0 %1414
        %1416 = vadd.xlane.f32.xlu0 %v1401
        %v1417 = vpop.xlane.xlu0 %1416
        %v1418 = vrcp.pop %v1403
        %v1419 = vmul.f32 1.0, %v1418
        %v1420 = vrcp.pop %v1405
        %v1421 = vmul.f32 1.0, %v1420
        %v1422 = vrcp.pop %v1407
        %v1423 = vmul.f32 1.0, %v1422
        %v1424 = vrcp.pop %v1409
        %v1425 = vmul.f32 1.0, %v1424
        %v1426 = vrcp.pop %v1411
        %v1427 = vmul.f32 1.0, %v1426
        %v1428 = vrcp.pop %v1413
        %v1429 = vmul.f32 1.0, %v1428
        %v1430 = vrcp.pop %v1415
        %v1431 = vmul.f32 1.0, %v1430
        %v1432 = vrcp.pop %v1417
        %v1433 = vmul.f32 1.0, %v1432
        %v1434 = vmul.f32 %v1387, %v1419
        %v1435 = vmul.f32 %v1389, %v1421
        %v1436 = vmul.f32 %v1391, %v1423
        %v1437 = vmul.f32 %v1393, %v1425
        %v1438 = vmul.f32 %v1395, %v1427
        %v1439 = vmul.f32 %v1397, %v1429
        %v1440 = vmul.f32 %v1399, %v1431
        %v1441 = vmul.f32 %v1401, %v1433
        %v1442 = vpack.c.bf16 %v1435, %v1434
        %v1443 = vpack.c.bf16 %v1437, %v1436
        %v1444 = vpack.c.bf16 %v1439, %v1438
        %v1445 = vpack.c.bf16 %v1441, %v1440
        %v1450 = vunpack.c.l.b16 %v1442
        %v1451 = vunpack.c.h.b16 %v1442
        %v1452 = vunpack.c.l.b16 %v1443
        %v1453 = vunpack.c.h.b16 %v1443
        %v1454 = vunpack.c.l.b16 %v1444
        %v1455 = vunpack.c.h.b16 %v1444
        %v1456 = vunpack.c.l.b16 %v1445
        %v1457 = vunpack.c.h.b16 %v1445
        %v1458 = vpack.c.b16 %v1450, %v1450
        %v1459 = vpack.c.b16 %v1451, %v1451
        %v1460 = vpack.c.b16 %v1452, %v1452
        %v1461 = vpack.c.b16 %v1453, %v1453
        %v1462 = vpack.c.b16 %v1454, %v1454
        %v1463 = vpack.c.b16 %v1455, %v1455
        %v1464 = vpack.c.b16 %v1456, %v1456
        %v1465 = vpack.c.b16 %v1457, %v1457
        %s1474 = scalar_lea.vmem %s310, 64 [#allocation8]
        %1475 = vst [vmem:[%s1474] sm:$0xf] %v1458
        %1476 = vst [vmem:[%s1474 + $0x4] sm:$0xf] %v1459
        %1477 = vst [vmem:[%s1474 + $0x8] sm:$0xf] %v1460
        %1478 = vst [vmem:[%s1474 + $0xc] sm:$0xf] %v1461
        %1479 = vst [vmem:[%s1474 + $0x10] sm:$0xf] %v1462
        %1480 = vst [vmem:[%s1474 + $0x14] sm:$0xf] %v1463
        %1481 = vst [vmem:[%s1474 + $0x18] sm:$0xf] %v1464
        %1482 = vst [vmem:[%s1474 + $0x1c] sm:$0xf] %v1465
        %v1483 = vld [vmem:[%s0] sm:$0xff]
        %v1484 = vld [vmem:[%s0 + $0x8] sm:$0xff]
        %v1485 = vld [vmem:[%s0 + $0x10] sm:$0xff]
        %v1486 = vld [vmem:[%s0 + $0x18] sm:$0xff]
        %v1487 = vld [vmem:[%s0 + $0x20] sm:$0xff]
        %v1488 = vld [vmem:[%s0 + $0x28] sm:$0xff]
        %v1489 = vld [vmem:[%s0 + $0x30] sm:$0xff]
        %v1490 = vld [vmem:[%s0 + $0x38] sm:$0xff]
        %v1491 = vld [vmem:[%s0 + $0x40] sm:$0xff]
        %v1492 = vld [vmem:[%s0 + $0x48] sm:$0xff]
        %v1493 = vld [vmem:[%s0 + $0x50] sm:$0xff]
        %v1494 = vld [vmem:[%s0 + $0x58] sm:$0xff]
        %v1495 = vld [vmem:[%s0 + $0x60] sm:$0xff]
        %v1496 = vld [vmem:[%s0 + $0x68] sm:$0xff]
        %v1497 = vld [vmem:[%s0 + $0x70] sm:$0xff]
        %v1498 = vld [vmem:[%s0 + $0x78] sm:$0xff]
        %1515 = vrot.lane.b32.xlu0 %v1483, 64
        %v1516 = vpop.permute.xlu0 %1515
        %1517 = vrot.lane.b32.xlu0 %v1484, 64
        %v1518 = vpop.permute.xlu0 %1517
        %1519 = vrot.lane.b32.xlu0 %v1485, 64
        %v1520 = vpop.permute.xlu0 %1519
        %1521 = vrot.lane.b32.xlu0 %v1486, 64
        %v1522 = vpop.permute.xlu0 %1521
        %1523 = vrot.lane.b32.xlu0 %v1487, 64
        %v1524 = vpop.permute.xlu0 %1523
        %1525 = vrot.lane.b32.xlu0 %v1488, 64
        %v1526 = vpop.permute.xlu0 %1525
        %1527 = vrot.lane.b32.xlu0 %v1489, 64
        %v1528 = vpop.permute.xlu0 %1527
        %1529 = vrot.lane.b32.xlu0 %v1490, 64
        %v1530 = vpop.permute.xlu0 %1529
        %1531 = vrot.lane.b32.xlu0 %v1491, 64
        %v1532 = vpop.permute.xlu0 %1531
        %1533 = vrot.lane.b32.xlu0 %v1492, 64
        %v1534 = vpop.permute.xlu0 %1533
        %1535 = vrot.lane.b32.xlu0 %v1493, 64
        %v1536 = vpop.permute.xlu0 %1535
        %1537 = vrot.lane.b32.xlu0 %v1494, 64
        %v1538 = vpop.permute.xlu0 %1537
        %1539 = vrot.lane.b32.xlu0 %v1495, 64
        %v1540 = vpop.permute.xlu0 %1539
        %1541 = vrot.lane.b32.xlu0 %v1496, 64
        %v1542 = vpop.permute.xlu0 %1541
        %1543 = vrot.lane.b32.xlu0 %v1497, 64
        %v1544 = vpop.permute.xlu0 %1543
        %1545 = vrot.lane.b32.xlu0 %v1498, 64
        %v1546 = vpop.permute.xlu0 %1545
        %1563 = vmatprep.subr.mxu0 0.0
        %1564 = vmatpush1.msra.mxu0 %v1516
        %1565 = vmatprep.subr.mxu0 0.0
        %1566 = vmatpush1.msra.mxu0 %v1518
        %1567 = vmatprep.subr.mxu0 0.0
        %1568 = vmatpush1.msra.mxu0 %v1520
        %1569 = vmatprep.subr.mxu0 0.0
        %1570 = vmatpush1.msra.mxu0 %v1522
        %1571 = vmatprep.subr.mxu0 0.0
        %1572 = vmatpush1.msra.mxu0 %v1524
        %1573 = vmatprep.subr.mxu0 0.0
        %1574 = vmatpush1.msra.mxu0 %v1526
        %1575 = vmatprep.subr.mxu0 0.0
        %1576 = vmatpush1.msra.mxu0 %v1528
        %1577 = vmatprep.subr.mxu0 0.0
        %1578 = vmatpush1.msra.mxu0 %v1530
        %1579 = vmatprep.subr.mxu0 0.0
        %1580 = vmatpush1.msra.mxu0 %v1532
        %1581 = vmatprep.subr.mxu0 0.0
        %1582 = vmatpush1.msra.mxu0 %v1534
        %1583 = vmatprep.subr.mxu0 0.0
        %1584 = vmatpush1.msra.mxu0 %v1536
        %1585 = vmatprep.subr.mxu0 0.0
        %1586 = vmatpush1.msra.mxu0 %v1538
        %1587 = vmatprep.subr.mxu0 0.0
        %1588 = vmatpush1.msra.mxu0 %v1540
        %1589 = vmatprep.subr.mxu0 0.0
        %1590 = vmatpush1.msra.mxu0 %v1542
        %1591 = vmatprep.subr.mxu0 0.0
        %1592 = vmatpush1.msra.mxu0 %v1544
        %1593 = vmatprep.subr.mxu0 0.0
        %1594 = vmatpush1.msra.mxu0 %v1546
        %1595 = vmatprep.subr.mxu0 0.0
        %1596 = vmatpush1.msra.mxu0 0.0
        %1597 = vmatprep.subr.mxu0 0.0
        %1598 = vmatpush1.msra.mxu0 0.0
        %1599 = vmatprep.subr.mxu0 0.0
        %1600 = vmatpush1.msra.mxu0 0.0
        %1601 = vmatprep.subr.mxu0 0.0
        %1602 = vmatpush1.msra.mxu0 0.0
        %1603 = vmatprep.subr.mxu0 0.0
        %1604 = vmatpush1.msra.mxu0 0.0
        %1605 = vmatprep.subr.mxu0 0.0
        %1606 = vmatpush1.msra.mxu0 0.0
        %1607 = vmatprep.subr.mxu0 0.0
        %1608 = vmatpush1.msra.mxu0 0.0
        %1609 = vmatprep.subr.mxu0 0.0
        %1610 = vmatpush1.msra.mxu0 0.0
        %1611 = vmatprep.subr.mxu0 0.0
        %1612 = vmatpush1.msra.mxu0 0.0
        %1613 = vmatprep.subr.mxu0 0.0
        %1614 = vmatpush1.msra.mxu0 0.0
        %1615 = vmatprep.subr.mxu0 0.0
        %1616 = vmatpush1.msra.mxu0 0.0
        %1617 = vmatprep.subr.mxu0 0.0
        %1618 = vmatpush1.msra.mxu0 0.0
        %1619 = vmatprep.subr.mxu0 0.0
        %1620 = vmatpush1.msra.mxu0 0.0
        %1621 = vmatprep.subr.mxu0 0.0
        %1622 = vmatpush1.msra.mxu0 0.0
        %1623 = vmatprep.subr.mxu0 0.0
        %1624 = vmatpush1.msra.mxu0 0.0
        %1625 = vmatprep.subr.mxu0 0.0
        %1626 = vmatpush1.msra.mxu0 0.0
        %1627 = vmatprep.mubr.f32.mxu0 0.0
        %1628 = vmatmul.mubr.f32.gmra.mrb[0].mxu0 %v1434
        %v1629 = vpop.f32.mrb[0].mxu0
        %v1630 = vadd.f32 0.0, %v1629
        %v1631 = vpop.f32.mrb[0].mxu0
        %1632 = vmatprep.mubr.f32.mxu0 0.0
        %1633 = vmatmul.mubr.f32.gmra.mrb[0].mxu0 %v1435
        %v1634 = vpop.f32.mrb[0].mxu0
        %v1635 = vadd.f32 0.0, %v1634
        %v1636 = vpop.f32.mrb[0].mxu0
        %1637 = vmatprep.mubr.f32.mxu0 0.0
        %1638 = vmatmul.mubr.f32.gmra.mrb[0].mxu0 %v1436
        %v1639 = vpop.f32.mrb[0].mxu0
        %v1640 = vadd.f32 0.0, %v1639
        %v1641 = vpop.f32.mrb[0].mxu0
        %1642 = vmatprep.mubr.f32.mxu0 0.0
        %1643 = vmatmul.mubr.f32.gmra.mrb[0].mxu0 %v1437
        %v1644 = vpop.f32.mrb[0].mxu0
        %v1645 = vadd.f32 0.0, %v1644
        %v1646 = vpop.f32.mrb[0].mxu0
        %1647 = vmatprep.mubr.f32.mxu0 0.0
        %1648 = vmatmul.mubr.f32.gmra.mrb[0].mxu0 %v1438
        %v1649 = vpop.f32.mrb[0].mxu0
        %v1650 = vadd.f32 0.0, %v1649
        %v1651 = vpop.f32.mrb[0].mxu0
        %1652 = vmatprep.mubr.f32.mxu0 0.0
        %1653 = vmatmul.mubr.f32.gmra.mrb[0].mxu0 %v1439
        %v1654 = vpop.f32.mrb[0].mxu0
        %v1655 = vadd.f32 0.0, %v1654
        %v1656 = vpop.f32.mrb[0].mxu0
        %1657 = vmatprep.mubr.f32.mxu0 0.0
        %1658 = vmatmul.mubr.f32.gmra.mrb[0].mxu0 %v1440
        %v1659 = vpop.f32.mrb[0].mxu0
        %v1660 = vadd.f32 0.0, %v1659
        %v1661 = vpop.f32.mrb[0].mxu0
        %1662 = vmatprep.mubr.f32.mxu0 0.0
        %1663 = vmatmul.mubr.f32.gmra.mrb[0].mxu0 %v1441
        %v1664 = vpop.f32.mrb[0].mxu0
        %v1665 = vadd.f32 0.0, %v1664
        %v1666 = vpop.f32.mrb[0].mxu0
        %1667 = vdwg.mxu0
        %1676 = vrot.lane.b32.xlu0 %v1630, 64
        %v1677 = vpop.permute.xlu0 %1676
        %1678 = vrot.lane.b32.xlu0 %v1635, 64
        %v1679 = vpop.permute.xlu0 %1678
        %1680 = vrot.lane.b32.xlu0 %v1640, 64
        %v1681 = vpop.permute.xlu0 %1680
        %1682 = vrot.lane.b32.xlu0 %v1645, 64
        %v1683 = vpop.permute.xlu0 %1682
        %1684 = vrot.lane.b32.xlu0 %v1650, 64
        %v1685 = vpop.permute.xlu0 %1684
        %1686 = vrot.lane.b32.xlu0 %v1655, 64
        %v1687 = vpop.permute.xlu0 %1686
        %1688 = vrot.lane.b32.xlu0 %v1660, 64
        %v1689 = vpop.permute.xlu0 %1688
        %1690 = vrot.lane.b32.xlu0 %v1665, 64
        %v1691 = vpop.permute.xlu0 %1690
        %vm1700 = vcmask 785920
        %1701 = vst.msk [vmem:[%s303] sm:$0xff] %vm1700, %v1677
        %1702 = vst.msk [vmem:[%s303 + $0x8] sm:$0xff] %vm1700, %v1679
        %1703 = vst.msk [vmem:[%s303 + $0x10] sm:$0xff] %vm1700, %v1681
        %1704 = vst.msk [vmem:[%s303 + $0x18] sm:$0xff] %vm1700, %v1683
        %1705 = vst.msk [vmem:[%s303 + $0x20] sm:$0xff] %vm1700, %v1685
        %1706 = vst.msk [vmem:[%s303 + $0x28] sm:$0xff] %vm1700, %v1687
        %1707 = vst.msk [vmem:[%s303 + $0x30] sm:$0xff] %vm1700, %v1689
        %1708 = vst.msk [vmem:[%s303 + $0x38] sm:$0xff] %vm1700, %v1691
        %s1709 = sld [smem:[#allocation2 + $0x3]]
        %v1710 = vstv %s1709
        %s1711 = sld [smem:[#allocation2 + $0x83]]
        %v1712 = vstv %s1711
        %v1713 = vsel %vm349, %v1712, %v1710
        %v1714 = vsel %vm350, %v1712, %v1710
        %v1715 = vsel %vm351, %v1712, %v1710
        %v1716 = vsel %vm352, %v1712, %v1710
        %v1717 = vsel %vm353, %v1712, %v1710
        %v1718 = vsel %vm354, %v1712, %v1710
        %v1719 = vsel %vm355, %v1712, %v1710
        %v1720 = vsel %vm356, %v1712, %v1710
        %s1721 = sld [smem:[#allocation2 + $0x103]]
        %v1722 = vstv %s1721
        %v1723 = vsel %vm367, %v1722, %v1713
        %v1724 = vsel %vm368, %v1722, %v1714
        %v1725 = vsel %vm369, %v1722, %v1715
        %v1726 = vsel %vm370, %v1722, %v1716
        %v1727 = vsel %vm371, %v1722, %v1717
        %v1728 = vsel %vm372, %v1722, %v1718
        %v1729 = vsel %vm373, %v1722, %v1719
        %v1730 = vsel %vm374, %v1722, %v1720
        %s1731 = sld [smem:[#allocation2 + $0x183]]
        %v1732 = vstv %s1731
        %v1733 = vsel %vm385, %v1732, %v1723
        %v1734 = vsel %vm386, %v1732, %v1724
        %v1735 = vsel %vm387, %v1732, %v1725
        %v1736 = vsel %vm388, %v1732, %v1726
        %v1737 = vsel %vm389, %v1732, %v1727
        %v1738 = vsel %vm390, %v1732, %v1728
        %v1739 = vsel %vm391, %v1732, %v1729
        %v1740 = vsel %vm392, %v1732, %v1730
        %s1741 = sld [smem:[#allocation2 + $0x203]]
        %v1742 = vstv %s1741
        %v1743 = vsel %vm403, %v1742, %v1733
        %v1744 = vsel %vm404, %v1742, %v1734
        %v1745 = vsel %vm405, %v1742, %v1735
        %v1746 = vsel %vm406, %v1742, %v1736
        %v1747 = vsel %vm407, %v1742, %v1737
        %v1748 = vsel %vm408, %v1742, %v1738
        %v1749 = vsel %vm409, %v1742, %v1739
        %v1750 = vsel %vm410, %v1742, %v1740
        %1751 = vset.pattern.permute.xlu0 3
        %1752 = vperm.xlu0 %1751, %v338
        %v1753 = vpop.permute.xlu0 %1752
        %1755 = vset.pattern.permute.xlu0 3
        %1756 = vperm.xlu0 %1755, %v339
        %v1757 = vpop.permute.xlu0 %1756
        %1759 = vset.pattern.permute.xlu0 3
        %1760 = vperm.xlu0 %1759, %v340
        %v1761 = vpop.permute.xlu0 %1760
        %1763 = vset.pattern.permute.xlu0 3
        %1764 = vperm.xlu0 %1763, %v341
        %v1765 = vpop.permute.xlu0 %1764
        %1767 = vset.pattern.permute.xlu0 3
        %1768 = vperm.xlu0 %1767, %v342
        %v1769 = vpop.permute.xlu0 %1768
        %1771 = vset.pattern.permute.xlu0 3
        %1772 = vperm.xlu0 %1771, %v343
        %v1773 = vpop.permute.xlu0 %1772
        %1775 = vset.pattern.permute.xlu0 3
        %1776 = vperm.xlu0 %1775, %v344
        %v1777 = vpop.permute.xlu0 %1776
        %1779 = vset.pattern.permute.xlu0 3
        %1780 = vperm.xlu0 %1779, %v345
        %v1781 = vpop.permute.xlu0 %1780
        %v1783 = vadd.f32 %v1743, %v1753
        %v1784 = vadd.f32 %v1744, %v1757
        %v1785 = vadd.f32 %v1745, %v1761
        %v1786 = vadd.f32 %v1746, %v1765
        %v1787 = vadd.f32 %v1747, %v1769
        %v1788 = vadd.f32 %v1748, %v1773
        %v1789 = vadd.f32 %v1749, %v1777
        %v1790 = vadd.f32 %v1750, %v1781
        %v1791 = vlaneseq
        %v1792 = vshrl.u32 %v1791, 7
        %v1793 = vsub.s32 3, %v1792
        %v1794 = vrot.slane %v346, %v1793
        %v1795 = vadd.f32 %v1783, %v1794
        %v1796 = vadd.f32 %v1784, %v1794
        %v1797 = vadd.f32 %v1785, %v1794
        %v1798 = vadd.f32 %v1786, %v1794
        %v1799 = vadd.f32 %v1787, %v1794
        %v1800 = vadd.f32 %v1788, %v1794
        %v1801 = vadd.f32 %v1789, %v1794
        %v1802 = vadd.f32 %v1790, %v1794
        %vm1803 = vcmp.gt.f32.partialorder %v1795, 0.0
        %vm1804 = vcmp.gt.f32.partialorder %v1796, 0.0
        %vm1805 = vcmp.gt.f32.partialorder %v1797, 0.0
        %vm1806 = vcmp.gt.f32.partialorder %v1798, 0.0
        %vm1807 = vcmp.gt.f32.partialorder %v1799, 0.0
        %vm1808 = vcmp.gt.f32.partialorder %v1800, 0.0
        %vm1809 = vcmp.gt.f32.partialorder %v1801, 0.0
        %vm1810 = vcmp.gt.f32.partialorder %v1802, 0.0
        %v1811 = vmul.f32 %v1795, 0.2
        %v1812 = vmul.f32 %v1796, 0.2
        %v1813 = vmul.f32 %v1797, 0.2
        %v1814 = vmul.f32 %v1798, 0.2
        %v1815 = vmul.f32 %v1799, 0.2
        %v1816 = vmul.f32 %v1800, 0.2
        %v1817 = vmul.f32 %v1801, 0.2
        %v1818 = vmul.f32 %v1802, 0.2
        %v1819 = vsel %vm1803, %v1795, %v1811
        %v1820 = vsel %vm1804, %v1796, %v1812
        %v1821 = vsel %vm1805, %v1797, %v1813
        %v1822 = vsel %vm1806, %v1798, %v1814
        %v1823 = vsel %vm1807, %v1799, %v1815
        %v1824 = vsel %vm1808, %v1800, %v1816
        %v1825 = vsel %vm1809, %v1801, %v1817
        %v1826 = vsel %vm1810, %v1802, %v1818
        %v1827 = vsel %vm330, %v1819, -1e+30
        %v1828 = vsel %vm331, %v1820, -1e+30
        %v1829 = vsel %vm332, %v1821, -1e+30
        %v1830 = vsel %vm333, %v1822, -1e+30
        %v1831 = vsel %vm334, %v1823, -1e+30
        %v1832 = vsel %vm335, %v1824, -1e+30
        %v1833 = vsel %vm336, %v1825, -1e+30
        %v1834 = vsel %vm337, %v1826, -1e+30
        %1835 = vmax.xlane.f32.xlu0 %v1827
        %v1836 = vpop.xlane.xlu0 %1835
        %1837 = vmax.xlane.f32.xlu0 %v1828
        %v1838 = vpop.xlane.xlu0 %1837
        %1839 = vmax.xlane.f32.xlu0 %v1829
        %v1840 = vpop.xlane.xlu0 %1839
        %1841 = vmax.xlane.f32.xlu0 %v1830
        %v1842 = vpop.xlane.xlu0 %1841
        %1843 = vmax.xlane.f32.xlu0 %v1831
        %v1844 = vpop.xlane.xlu0 %1843
        %1845 = vmax.xlane.f32.xlu0 %v1832
        %v1846 = vpop.xlane.xlu0 %1845
        %1847 = vmax.xlane.f32.xlu0 %v1833
        %v1848 = vpop.xlane.xlu0 %1847
        %1849 = vmax.xlane.f32.xlu0 %v1834
        %v1850 = vpop.xlane.xlu0 %1849
        %v1851 = vsub.f32 %v1827, %v1836
        %v1852 = vsub.f32 %v1828, %v1838
        %v1853 = vsub.f32 %v1829, %v1840
        %v1854 = vsub.f32 %v1830, %v1842
        %v1855 = vsub.f32 %v1831, %v1844
        %v1856 = vsub.f32 %v1832, %v1846
        %v1857 = vsub.f32 %v1833, %v1848
        %v1858 = vsub.f32 %v1834, %v1850
        %v1859 = vmul.f32 %v1851, 1.442695
        %v1860 = vpow.pop %v1859
        %v1861 = vmul.f32 %v1852, 1.442695
        %v1862 = vpow.pop %v1861
        %v1863 = vmul.f32 %v1853, 1.442695
        %v1864 = vpow.pop %v1863
        %v1865 = vmul.f32 %v1854, 1.442695
        %v1866 = vpow.pop %v1865
        %v1867 = vmul.f32 %v1855, 1.442695
        %v1868 = vpow.pop %v1867
        %v1869 = vmul.f32 %v1856, 1.442695
        %v1870 = vpow.pop %v1869
        %v1871 = vmul.f32 %v1857, 1.442695
        %v1872 = vpow.pop %v1871
        %v1873 = vmul.f32 %v1858, 1.442695
        %v1874 = vpow.pop %v1873
        %1875 = vadd.xlane.f32.xlu0 %v1860
        %v1876 = vpop.xlane.xlu0 %1875
        %1877 = vadd.xlane.f32.xlu0 %v1862
        %v1878 = vpop.xlane.xlu0 %1877
        %1879 = vadd.xlane.f32.xlu0 %v1864
        %v1880 = vpop.xlane.xlu0 %1879
        %1881 = vadd.xlane.f32.xlu0 %v1866
        %v1882 = vpop.xlane.xlu0 %1881
        %1883 = vadd.xlane.f32.xlu0 %v1868
        %v1884 = vpop.xlane.xlu0 %1883
        %1885 = vadd.xlane.f32.xlu0 %v1870
        %v1886 = vpop.xlane.xlu0 %1885
        %1887 = vadd.xlane.f32.xlu0 %v1872
        %v1888 = vpop.xlane.xlu0 %1887
        %1889 = vadd.xlane.f32.xlu0 %v1874
        %v1890 = vpop.xlane.xlu0 %1889
        %v1891 = vrcp.pop %v1876
        %v1892 = vmul.f32 1.0, %v1891
        %v1893 = vrcp.pop %v1878
        %v1894 = vmul.f32 1.0, %v1893
        %v1895 = vrcp.pop %v1880
        %v1896 = vmul.f32 1.0, %v1895
        %v1897 = vrcp.pop %v1882
        %v1898 = vmul.f32 1.0, %v1897
        %v1899 = vrcp.pop %v1884
        %v1900 = vmul.f32 1.0, %v1899
        %v1901 = vrcp.pop %v1886
        %v1902 = vmul.f32 1.0, %v1901
        %v1903 = vrcp.pop %v1888
        %v1904 = vmul.f32 1.0, %v1903
        %v1905 = vrcp.pop %v1890
        %v1906 = vmul.f32 1.0, %v1905
        %v1907 = vmul.f32 %v1860, %v1892
        %v1908 = vmul.f32 %v1862, %v1894
        %v1909 = vmul.f32 %v1864, %v1896
        %v1910 = vmul.f32 %v1866, %v1898
        %v1911 = vmul.f32 %v1868, %v1900
        %v1912 = vmul.f32 %v1870, %v1902
        %v1913 = vmul.f32 %v1872, %v1904
        %v1914 = vmul.f32 %v1874, %v1906
        %v1915 = vpack.c.bf16 %v1908, %v1907
        %v1916 = vpack.c.bf16 %v1910, %v1909
        %v1917 = vpack.c.bf16 %v1912, %v1911
        %v1918 = vpack.c.bf16 %v1914, %v1913
        %v1923 = vunpack.c.l.b16 %v1915
        %v1924 = vunpack.c.h.b16 %v1915
        %v1925 = vunpack.c.l.b16 %v1916
        %v1926 = vunpack.c.h.b16 %v1916
        %v1927 = vunpack.c.l.b16 %v1917
        %v1928 = vunpack.c.h.b16 %v1917
        %v1929 = vunpack.c.l.b16 %v1918
        %v1930 = vunpack.c.h.b16 %v1918
        %v1931 = vpack.c.b16 %v1923, %v1923
        %v1932 = vpack.c.b16 %v1924, %v1924
        %v1933 = vpack.c.b16 %v1925, %v1925
        %v1934 = vpack.c.b16 %v1926, %v1926
        %v1935 = vpack.c.b16 %v1927, %v1927
        %v1936 = vpack.c.b16 %v1928, %v1928
        %v1937 = vpack.c.b16 %v1929, %v1929
        %v1938 = vpack.c.b16 %v1930, %v1930
        %s1947 = scalar_lea.vmem %s310, 96 [#allocation8]
        %1948 = vst [vmem:[%s1947] sm:$0xf] %v1931
        %1949 = vst [vmem:[%s1947 + $0x4] sm:$0xf] %v1932
        %1950 = vst [vmem:[%s1947 + $0x8] sm:$0xf] %v1933
        %1951 = vst [vmem:[%s1947 + $0xc] sm:$0xf] %v1934
        %1952 = vst [vmem:[%s1947 + $0x10] sm:$0xf] %v1935
        %1953 = vst [vmem:[%s1947 + $0x14] sm:$0xf] %v1936
        %1954 = vst [vmem:[%s1947 + $0x18] sm:$0xf] %v1937
        %1955 = vst [vmem:[%s1947 + $0x1c] sm:$0xf] %v1938
        %v1956 = vld [vmem:[%s0] sm:$0xff]
        %v1957 = vld [vmem:[%s0 + $0x8] sm:$0xff]
        %v1958 = vld [vmem:[%s0 + $0x10] sm:$0xff]
        %v1959 = vld [vmem:[%s0 + $0x18] sm:$0xff]
        %v1960 = vld [vmem:[%s0 + $0x20] sm:$0xff]
        %v1961 = vld [vmem:[%s0 + $0x28] sm:$0xff]
        %v1962 = vld [vmem:[%s0 + $0x30] sm:$0xff]
        %v1963 = vld [vmem:[%s0 + $0x38] sm:$0xff]
        %v1964 = vld [vmem:[%s0 + $0x40] sm:$0xff]
        %v1965 = vld [vmem:[%s0 + $0x48] sm:$0xff]
        %v1966 = vld [vmem:[%s0 + $0x50] sm:$0xff]
        %v1967 = vld [vmem:[%s0 + $0x58] sm:$0xff]
        %v1968 = vld [vmem:[%s0 + $0x60] sm:$0xff]
        %v1969 = vld [vmem:[%s0 + $0x68] sm:$0xff]
        %v1970 = vld [vmem:[%s0 + $0x70] sm:$0xff]
        %v1971 = vld [vmem:[%s0 + $0x78] sm:$0xff]
        %1988 = vrot.lane.b32.xlu0 %v1956, 32
        %v1989 = vpop.permute.xlu0 %1988
        %1990 = vrot.lane.b32.xlu0 %v1957, 32
        %v1991 = vpop.permute.xlu0 %1990
        %1992 = vrot.lane.b32.xlu0 %v1958, 32
        %v1993 = vpop.permute.xlu0 %1992
        %1994 = vrot.lane.b32.xlu0 %v1959, 32
        %v1995 = vpop.permute.xlu0 %1994
        %1996 = vrot.lane.b32.xlu0 %v1960, 32
        %v1997 = vpop.permute.xlu0 %1996
        %1998 = vrot.lane.b32.xlu0 %v1961, 32
        %v1999 = vpop.permute.xlu0 %1998
        %2000 = vrot.lane.b32.xlu0 %v1962, 32
        %v2001 = vpop.permute.xlu0 %2000
        %2002 = vrot.lane.b32.xlu0 %v1963, 32
        %v2003 = vpop.permute.xlu0 %2002
        %2004 = vrot.lane.b32.xlu0 %v1964, 32
        %v2005 = vpop.permute.xlu0 %2004
        %2006 = vrot.lane.b32.xlu0 %v1965, 32
        %v2007 = vpop.permute.xlu0 %2006
        %2008 = vrot.lane.b32.xlu0 %v1966, 32
        %v2009 = vpop.permute.xlu0 %2008
        %2010 = vrot.lane.b32.xlu0 %v1967, 32
        %v2011 = vpop.permute.xlu0 %2010
        %2012 = vrot.lane.b32.xlu0 %v1968, 32
        %v2013 = vpop.permute.xlu0 %2012
        %2014 = vrot.lane.b32.xlu0 %v1969, 32
        %v2015 = vpop.permute.xlu0 %2014
        %2016 = vrot.lane.b32.xlu0 %v1970, 32
        %v2017 = vpop.permute.xlu0 %2016
        %2018 = vrot.lane.b32.xlu0 %v1971, 32
        %v2019 = vpop.permute.xlu0 %2018
        %2036 = vmatprep.subr.mxu0 0.0
        %2037 = vmatpush1.msra.mxu0 %v1989
        %2038 = vmatprep.subr.mxu0 0.0
        %2039 = vmatpush1.msra.mxu0 %v1991
        %2040 = vmatprep.subr.mxu0 0.0
        %2041 = vmatpush1.msra.mxu0 %v1993
        %2042 = vmatprep.subr.mxu0 0.0
        %2043 = vmatpush1.msra.mxu0 %v1995
        %2044 = vmatprep.subr.mxu0 0.0
        %2045 = vmatpush1.msra.mxu0 %v1997
        %2046 = vmatprep.subr.mxu0 0.0
        %2047 = vmatpush1.msra.mxu0 %v1999
        %2048 = vmatprep.subr.mxu0 0.0
        %2049 = vmatpush1.msra.mxu0 %v2001
        %2050 = vmatprep.subr.mxu0 0.0
        %2051 = vmatpush1.msra.mxu0 %v2003
        %2052 = vmatprep.subr.mxu0 0.0
        %2053 = vmatpush1.msra.mxu0 %v2005
        %2054 = vmatprep.subr.mxu0 0.0
        %2055 = vmatpush1.msra.mxu0 %v2007
        %2056 = vmatprep.subr.mxu0 0.0
        %2057 = vmatpush1.msra.mxu0 %v2009
        %2058 = vmatprep.subr.mxu0 0.0
        %2059 = vmatpush1.msra.mxu0 %v2011
        %2060 = vmatprep.subr.mxu0 0.0
        %2061 = vmatpush1.msra.mxu0 %v2013
        %2062 = vmatprep.subr.mxu0 0.0
        %2063 = vmatpush1.msra.mxu0 %v2015
        %2064 = vmatprep.subr.mxu0 0.0
        %2065 = vmatpush1.msra.mxu0 %v2017
        %2066 = vmatprep.subr.mxu0 0.0
        %2067 = vmatpush1.msra.mxu0 %v2019
        %2068 = vmatprep.subr.mxu0 0.0
        %2069 = vmatpush1.msra.mxu0 0.0
        %2070 = vmatprep.subr.mxu0 0.0
        %2071 = vmatpush1.msra.mxu0 0.0
        %2072 = vmatprep.subr.mxu0 0.0
        %2073 = vmatpush1.msra.mxu0 0.0
        %2074 = vmatprep.subr.mxu0 0.0
        %2075 = vmatpush1.msra.mxu0 0.0
        %2076 = vmatprep.subr.mxu0 0.0
        %2077 = vmatpush1.msra.mxu0 0.0
        %2078 = vmatprep.subr.mxu0 0.0
        %2079 = vmatpush1.msra.mxu0 0.0
        %2080 = vmatprep.subr.mxu0 0.0
        %2081 = vmatpush1.msra.mxu0 0.0
        %2082 = vmatprep.subr.mxu0 0.0
        %2083 = vmatpush1.msra.mxu0 0.0
        %2084 = vmatprep.subr.mxu0 0.0
        %2085 = vmatpush1.msra.mxu0 0.0
        %2086 = vmatprep.subr.mxu0 0.0
        %2087 = vmatpush1.msra.mxu0 0.0
        %2088 = vmatprep.subr.mxu0 0.0
        %2089 = vmatpush1.msra.mxu0 0.0
        %2090 = vmatprep.subr.mxu0 0.0
        %2091 = vmatpush1.msra.mxu0 0.0
        %2092 = vmatprep.subr.mxu0 0.0
        %2093 = vmatpush1.msra.mxu0 0.0
        %2094 = vmatprep.subr.mxu0 0.0
        %2095 = vmatpush1.msra.mxu0 0.0
        %2096 = vmatprep.subr.mxu0 0.0
        %2097 = vmatpush1.msra.mxu0 0.0
        %2098 = vmatprep.subr.mxu0 0.0
        %2099 = vmatpush1.msra.mxu0 0.0
        %2100 = vmatprep.mubr.f32.mxu0 0.0
        %2101 = vmatmul.mubr.f32.gmra.mrb[0].mxu0 %v1907
        %v2102 = vpop.f32.mrb[0].mxu0
        %v2103 = vadd.f32 0.0, %v2102
        %v2104 = vpop.f32.mrb[0].mxu0
        %2105 = vmatprep.mubr.f32.mxu0 0.0
        %2106 = vmatmul.mubr.f32.gmra.mrb[0].mxu0 %v1908
        %v2107 = vpop.f32.mrb[0].mxu0
        %v2108 = vadd.f32 0.0, %v2107
        %v2109 = vpop.f32.mrb[0].mxu0
        %2110 = vmatprep.mubr.f32.mxu0 0.0
        %2111 = vmatmul.mubr.f32.gmra.mrb[0].mxu0 %v1909
        %v2112 = vpop.f32.mrb[0].mxu0
        %v2113 = vadd.f32 0.0, %v2112
        %v2114 = vpop.f32.mrb[0].mxu0
        %2115 = vmatprep.mubr.f32.mxu0 0.0
        %2116 = vmatmul.mubr.f32.gmra.mrb[0].mxu0 %v1910
        %v2117 = vpop.f32.mrb[0].mxu0
        %v2118 = vadd.f32 0.0, %v2117
        %v2119 = vpop.f32.mrb[0].mxu0
        %2120 = vmatprep.mubr.f32.mxu0 0.0
        %2121 = vmatmul.mubr.f32.gmra.mrb[0].mxu0 %v1911
        %v2122 = vpop.f32.mrb[0].mxu0
        %v2123 = vadd.f32 0.0, %v2122
        %v2124 = vpop.f32.mrb[0].mxu0
        %2125 = vmatprep.mubr.f32.mxu0 0.0
        %2126 = vmatmul.mubr.f32.gmra.mrb[0].mxu0 %v1912
        %v2127 = vpop.f32.mrb[0].mxu0
        %v2128 = vadd.f32 0.0, %v2127
        %v2129 = vpop.f32.mrb[0].mxu0
        %2130 = vmatprep.mubr.f32.mxu0 0.0
        %2131 = vmatmul.mubr.f32.gmra.mrb[0].mxu0 %v1913
        %v2132 = vpop.f32.mrb[0].mxu0
        %v2133 = vadd.f32 0.0, %v2132
        %v2134 = vpop.f32.mrb[0].mxu0
        %2135 = vmatprep.mubr.f32.mxu0 0.0
        %2136 = vmatmul.mubr.f32.gmra.mrb[0].mxu0 %v1914
        %v2137 = vpop.f32.mrb[0].mxu0
        %v2138 = vadd.f32 0.0, %v2137
        %v2139 = vpop.f32.mrb[0].mxu0
        %2140 = vdwg.mxu0
        %2149 = vrot.lane.b32.xlu0 %v2103, 96
        %v2150 = vpop.permute.xlu0 %2149
        %2151 = vrot.lane.b32.xlu0 %v2108, 96
        %v2152 = vpop.permute.xlu0 %2151
        %2153 = vrot.lane.b32.xlu0 %v2113, 96
        %v2154 = vpop.permute.xlu0 %2153
        %2155 = vrot.lane.b32.xlu0 %v2118, 96
        %v2156 = vpop.permute.xlu0 %2155
        %2157 = vrot.lane.b32.xlu0 %v2123, 96
        %v2158 = vpop.permute.xlu0 %2157
        %2159 = vrot.lane.b32.xlu0 %v2128, 96
        %v2160 = vpop.permute.xlu0 %2159
        %2161 = vrot.lane.b32.xlu0 %v2133, 96
        %v2162 = vpop.permute.xlu0 %2161
        %2163 = vrot.lane.b32.xlu0 %v2138, 96
        %v2164 = vpop.permute.xlu0 %2163
        %vm2173 = vcmask 1048320
        %2174 = vst.msk [vmem:[%s303] sm:$0xff] %vm2173, %v2150
        %2175 = vst.msk [vmem:[%s303 + $0x8] sm:$0xff] %vm2173, %v2152
        %2176 = vst.msk [vmem:[%s303 + $0x10] sm:$0xff] %vm2173, %v2154
        %2177 = vst.msk [vmem:[%s303 + $0x18] sm:$0xff] %vm2173, %v2156
        %2178 = vst.msk [vmem:[%s303 + $0x20] sm:$0xff] %vm2173, %v2158
        %2179 = vst.msk [vmem:[%s303 + $0x28] sm:$0xff] %vm2173, %v2160
        %2180 = vst.msk [vmem:[%s303 + $0x30] sm:$0xff] %vm2173, %v2162
        %2181 = vst.msk [vmem:[%s303 + $0x38] sm:$0xff] %vm2173, %v2164
        %s2182 = sand.u32 %s151, 1
        %s2183 = scalar_lea.sflag [#allocation4], %s2182
        %s2184 = sand.u32 %s151, 1
        %s2185 = smul.addr %s2184, 64
        %s2186 = scalar_lea.vmem [#allocation7], %s2185
        %s2187 = sand.u32 %s177, 1
        %s2188 = scalar_lea.sflag [#allocation9], %s2187
        %s2189 = sand.u32 %s177, 1
        %s2190 = smul.addr %s2189, 128
        %s2191 = scalar_lea.vmem [#allocation8], %s2190
        // Predicated region
        $region49: #{tpu_custom_call.1} parent=39 // pred_check
          %p2192 = pneg %p161
        $region50: #{tpu_custom_call.1} parent=39 // pred_check_branch
          %2194 = sbr.rel (%p2192) target = $region52
        $region51: #{tpu_custom_call.1} parent=39 // pred_region
          %s2195 = smul.u32 8, %s28
          %s2197 = ssub.s32 1024, 1024
          %2198 = vsyncadd %s2183, %s2197
          %s2199 = smul.addr %s2195, 128
          %s2200 = scalar_lea.hbm %s5, %s2199
          %s2201 = sshll.u32 %s2186, 4
          %s2202 = int_to_ptr.vmem [resolvable:$true] %s2201
          %2207 = dma.vmem_to_hbm [thread:$0]  %s2202, 1024, %s2200, %s2183, 128, 128, 8
        $region52: #{tpu_custom_call.1} parent=39 // pred_fallthru
          _
        // Predicated region
        $region53: #{tpu_custom_call.1} parent=39 // pred_check
          %p2208 = pneg %p187
        $region54: #{tpu_custom_call.1} parent=39 // pred_check_branch
          %2210 = sbr.rel (%p2208) target = $region56
        $region55: #{tpu_custom_call.1} parent=39 // pred_region
          #allocation11 [shape = 'u32[6]{0}', space=smem, size = 0x18, scoped, tag = 'DMA stride descriptor']
          %s2211 = smul.u32 8, %s28
          %s2213 = ssub.s32 2048, 2048
          %2214 = vsyncadd %s2188, %s2213
          %s2215 = smul.addr %s2211, 64
          %s2216 = scalar_lea.hbm %s6, %s2215
          %s2218 = sshll.u32 1, 14
          %s2219 = sxor.u32 4294967295, %s2218
          %s2222 = sshll.u32 7, 18
          %s2223 = sxor.u32 4294967295, %s2222
          %s2224 = sand.u32 0, %s2223
          %s2226 = sor.u32 %s2224, 0
          %s2228 = sshll.u32 3, 24
          %s2229 = sxor.u32 4294967295, %s2228
          %s2230 = sand.u32 %s2226, %s2229
          %s2232 = sor.u32 %s2230, 0
          %s2233 = sshll.u32 %s2191, 4
          %s2234 = int_to_ptr.vmem [resolvable:$true] %s2233
          %2240 = sst [smem:[#allocation11]] 512
          %s2241 = scalar_lea.smem [#allocation11], 1
          %2242 = sst [smem:[%s2241]] 1024
          %s2243 = scalar_lea.smem [#allocation11], 2
          %2244 = sst [smem:[%s2243]] 8
          %s2245 = scalar_lea.smem [#allocation11], 3
          %2246 = sst [smem:[%s2245]] 64
          %s2247 = scalar_lea.smem [#allocation11], 4
          %2248 = sst [smem:[%s2247]] 64
          %s2249 = scalar_lea.smem [#allocation11], 5
          %2250 = sst [smem:[%s2249]] 4
          %2252 = dma.general %s2234, 2048, %s2216, %s2188, [#allocation10], [#allocation11], %s2232, 0
        $region56: #{tpu_custom_call.1} parent=39 // pred_fallthru
          _
      $region40: #{tpu_custom_call.1} parent=5 // pred_fallthru
        _
      %p2253 = scmp.le.s32.totalorder 2, %s23
      // Predicated region
      $region57: #{tpu_custom_call.1} parent=5 // pred_check
        %p2254 = pneg %p2253
      $region58: #{tpu_custom_call.1} parent=5 // pred_check_branch
        %2256 = sbr.rel (%p2254) target = $region60
      $region59: #{tpu_custom_call.1} parent=5 // pred_region
        %s2257 = ssub.s32 %s23, 2
        // Predicated region
        $region61: #{tpu_custom_call.1} parent=59 // pred_check
          %p2258 = pneg %p167
        $region62: #{tpu_custom_call.1} parent=59 // pred_check_branch
          %2260 = sbr.rel (%p2258) target = $region64
        $region63: #{tpu_custom_call.1} parent=59 // pred_region
          %s2261 = sand.u32 %s152, 1
          %s2262 = scalar_lea.sflag [#allocation4], %s2261
          %s2263 = sand.u32 %s152, 1
          %s2264 = smul.addr %s2263, 64
          %s2265 = scalar_lea.vmem [#allocation7], %s2264
          %2266 = dma.done %s2262, 1024
        $region64: #{tpu_custom_call.1} parent=59 // pred_fallthru
          _
        // Predicated region
        $region65: #{tpu_custom_call.1} parent=59 // pred_check
          %p2267 = pneg %p193
        $region66: #{tpu_custom_call.1} parent=59 // pred_check_branch
          %2269 = sbr.rel (%p2267) target = $region68
        $region67: #{tpu_custom_call.1} parent=59 // pred_region
          %s2270 = sand.u32 %s178, 1
          %s2271 = scalar_lea.sflag [#allocation9], %s2270
          %s2272 = sand.u32 %s178, 1
          %s2273 = smul.addr %s2272, 128
          %s2274 = scalar_lea.vmem [#allocation8], %s2273
          %2275 = dma.done %s2271, 2048
        $region68: #{tpu_custom_call.1} parent=59 // pred_fallthru
          _
      $region60: #{tpu_custom_call.1} parent=5 // pred_fallthru
        _
    $region6: #{tpu_custom_call.1} parent=1 // loop_footer
      %s27 = sadd.s32 1, %s23
    $region7: #{tpu_custom_call.1} parent=1 // loop_footer_branch
      %22 = sbr.rel target = $region3
    $region8: #{tpu_custom_call.1} parent=1 // loop_exit
      _
    %2276 = vsyncpa [#allocation3], 1
    %s2277 = scalar_lea.sflag [#allocation3], 1
    %2278 = vsyncpa %s2277, 1
    %2279 = vsyncpa [#allocation4], 1
    %s2280 = scalar_lea.sflag [#allocation4], 1
    %2281 = vsyncpa %s2280, 1
    %2282 = vsyncpa [#allocation9], 1
    %s2283 = scalar_lea.sflag [#allocation9], 1
    %2284 = vsyncpa %s2283, 1
    %2285 = vsyncpa [#allocation5], 1
    %s2286 = scalar_lea.sflag [#allocation5], 1
    %2287 = vsyncpa %s2286, 1

</llo_original>
